<compile_context>
chip_gen: v7x
topology: tpu7x:2x2x1
jax: 0.10.0
libtpu: 0.0.40
codegen_flags: <defaults>
</compile_context>

<pallas_src>
import math
import numpy as np

import jax
import jax.numpy as jnp
from jax.experimental import pallas as pl
from jax.experimental.pallas import tpu as pltpu

SAMPLE_RATE = 16000
NUM_CLASSES = 8
BN_EPS = 1e-5


# =============================================================================
# Host-side (numpy) feature extraction — mirrors _compute_Mel_Spectrogram_feature_v2.
# (scipy.signal.spectrogram reimplemented with plain numpy: periodic Hann window,
#  one-sided PSD, 'density' scaling, no detrend — runs on CPU like the PyTorch module.)
# =============================================================================

def log_specgram_np(audio, sample_rate, window_size=40, step_size=20, eps=1e-10):
    nperseg = int(round(window_size * sample_rate / 1000.0))   # 640
    noverlap = int(round(step_size * sample_rate / 1000.0))    # 320
    step = nperseg - noverlap
    n = np.arange(nperseg)
    win = (0.5 - 0.5 * np.cos(2.0 * np.pi * n / nperseg)).astype(np.float64)  # periodic hann
    nframes = (len(audio) - noverlap) // step
    idx = np.arange(nperseg)[None, :] + step * np.arange(nframes)[:, None]
    frames = audio[idx].astype(np.float64) * win[None, :]
    spec = np.abs(np.fft.rfft(frames, axis=1)) ** 2
    spec *= 1.0 / (sample_rate * np.sum(win * win))
    if nperseg % 2 == 0:
        spec[:, 1:-1] *= 2.0
    else:
        spec[:, 1:] *= 2.0
    return np.log(spec.astype(np.float32) + eps)               # [time, freq]


def get_3d_spec(Sxx_in, moments=None):
    if moments is not None:
        base_mean, base_std, delta_mean, delta_std, delta2_mean, delta2_std = moments
    else:
        base_mean, delta_mean, delta2_mean = (0, 0, 0)
        base_std, delta_std, delta2_std = (1, 1, 1)
    h, w = Sxx_in.shape
    right1 = np.concatenate([Sxx_in[:, 0].reshape((h, -1)), Sxx_in], axis=1)[:, :-1]
    delta = (Sxx_in - right1)[:, 1:]
    delta_pad = delta[:, 0].reshape((h, -1))
    delta = np.concatenate([delta_pad, delta], axis=1)
    right2 = np.concatenate([delta[:, 0].reshape((h, -1)), delta], axis=1)[:, :-1]
    delta2 = (delta - right2)[:, 1:]
    delta2_pad = delta2[:, 0].reshape((h, -1))
    delta2 = np.concatenate([delta2_pad, delta2], axis=1)
    base = (Sxx_in - base_mean) / base_std
    delta = (delta - delta_mean) / delta_std
    delta2 = (delta2 - delta2_mean) / delta2_std
    stacked = [arr.reshape((h, w, 1)) for arr in (base, delta, delta2)]
    return np.concatenate(stacked, axis=2)


def _waveform_to_3d_mel_spec(waveform, sample_rate):
    spec = log_specgram_np(waveform, sample_rate)
    spec_3d = get_3d_spec(spec)
    return np.transpose(spec_3d, (2, 0, 1))          # [3, T, F]


def compute_mel_spectrogram_batch(x_np):
    feats = [_waveform_to_3d_mel_spec(x_np[i], SAMPLE_RATE)[None] for i in range(x_np.shape[0])]
    return np.concatenate(feats, axis=0).astype(np.float32)    # [B, 3, T, F]


# =============================================================================
# Helpers
# =============================================================================

def _round_up(x, m):
    return -(-x // m) * m


# =============================================================================
# Pallas kernel 1: fused matmul + bias (+residual) (+ReLU)
#   used for all 1x1 convs, the stem/stride-2 im2col convs, and the FC layer.
#   A [Mp, K] bf16 x W [K, N] bf16 -> f32 acc -> +bias (+res) (+relu) -> out.
#   TM adapts to the (small) real M; padding only to multiples of 8.
# =============================================================================

_MM_CACHE = {}


def _get_mm_kernel(Mp, K, N, TM, TN, relu, has_res, out_dtype):
    key = (Mp, K, N, TM, TN, relu, has_res, jnp.dtype(out_dtype).name)
    if key in _MM_CACHE:
        return _MM_CACHE[key]

    def kernel(a_ref, w_ref, b_ref, *rest):
        if has_res:
            r_ref, o_ref = rest
        else:
            (o_ref,) = rest
        acc = jnp.dot(a_ref[...], w_ref[...], preferred_element_type=jnp.float32)
        y = acc + b_ref[...]
        if has_res:
            y = y + r_ref[...].astype(jnp.float32)
        if relu:
            y = jnp.maximum(y, 0.0)
        o_ref[...] = y.astype(o_ref.dtype)

    in_specs = [
        pl.BlockSpec((TM, K), lambda i, j: (i, 0)),    # activation tile
        pl.BlockSpec((K, TN), lambda i, j: (0, j)),    # (BN-folded) weight tile
        pl.BlockSpec((1, TN), lambda i, j: (0, j)),    # folded BN bias
    ]
    if has_res:
        in_specs.append(pl.BlockSpec((TM, TN), lambda i, j: (i, j)))

    fn = jax.jit(pl.pallas_call(
        kernel,
        out_shape=jax.ShapeDtypeStruct((Mp, N), out_dtype),
        grid=(Mp // TM, N // TN),
        in_specs=in_specs,
        out_specs=pl.BlockSpec((TM, TN), lambda i, j: (i, j)),
        compiler_params=pltpu.CompilerParams(
            dimension_semantics=("parallel", "parallel")),
    ))
    _MM_CACHE[key] = fn
    return fn


def fused_matmul(a, w, bias, res=None, relu=True, out_dtype=jnp.bfloat16):
    """a [M,K] bf16 @ w [K,N] bf16 + bias[1,N] (+res[M,N]) (+relu) -> [M,N] out_dtype."""
    M, K = a.shape
    N = w.shape[1]
    M8 = _round_up(M, 8)
    # single M block when modest, otherwise tile M by 256
    if M8 <= 2048 and M8 * max(K, N) <= (1 << 21):
        TM, Mp = M8, M8
    else:
        TM = 256
        Mp = _round_up(M, TM)
    TN = 128 if N % 128 == 0 else N

    a_p = a if Mp == M else jnp.pad(a, ((0, Mp - M), (0, 0)))
    args = [a_p, w, bias]
    if res is not None:
        r_p = res if Mp == M else jnp.pad(res, ((0, Mp - M), (0, 0)))
        args.append(r_p)
    out = _get_mm_kernel(Mp, K, N, TM, TN, relu, res is not None, out_dtype)(*args)
    return out if Mp == M else out[:M]


# =============================================================================
# Pallas kernel 2: direct 3x3 stride-1 conv + bias + ReLU (in-kernel "im2col").
#   The padded image is flattened to (Hp*Wp, Cin); each tap (di,dj) is then the
#   contiguous row-slab shifted by di*Wp+dj, so the kernel accumulates 9 MXU dots
#   without ever materializing a 9x-duplicated patch matrix in HBM.
# =============================================================================

_CONV3_CACHE = {}


def conv3x3_s1(x, w9, bias, relu=True):
    """x [B,H,W,Cin] bf16; w9 [9,Cin,N] bf16 (BN scale folded); bias [1,N] f32."""
    B, H, W, Cin = x.shape
    N = w9.shape[2]
    Hp, Wp = H + 2, W + 2
    Ho, Wo = H, W
    Mrows = Ho * Wp                       # computed rows per batch (last Wp-Wo cols per row are junk)
    need = _round_up(Hp * Wp + 2, 8)      # flat rows needed so the last tap slice stays in-bounds
    TN = 128 if N % 128 == 0 else N

    xp = jnp.pad(x, ((0, 0), (1, 1), (1, 1), (0, 0)))
    xf = xp.reshape(B, Hp * Wp, Cin)
    xf = jnp.pad(xf, ((0, 0), (0, need - Hp * Wp), (0, 0)))

    key = (B, H, W, Cin, N, TN, relu)
    if key not in _CONV3_CACHE:
        def kernel(x_ref, w_ref, b_ref, o_ref):
            acc = None
            for di in range(3):
                for dj in range(3):
                    off = di * Wp + dj
                    a = x_ref[0, off:off + Mrows, :]              # (Mrows, Cin) bf16
                    d = jnp.dot(a, w_ref[di * 3 + dj],
                                preferred_element_type=jnp.float32)
                    acc = d if acc is None else acc + d
            y = acc + b_ref[...]
            if relu:
                y = jnp.maximum(y, 0.0)
            o_ref[0] = y.astype(o_ref.dtype)

        _CONV3_CACHE[key] = jax.jit(pl.pallas_call(
            kernel,
            out_shape=jax.ShapeDtypeStruct((B, Mrows, N), jnp.bfloat16),
            grid=(B, N // TN),
            in_specs=[
                pl.BlockSpec((1, need, Cin), lambda b, j: (b, 0, 0)),
                pl.BlockSpec((9, Cin, TN), lambda b, j: (0, 0, j)),
                pl.BlockSpec((1, TN), lambda b, j: (0, j)),
            ],
            out_specs=pl.BlockSpec((1, Mrows, TN), lambda b, j: (b, 0, j)),
            compiler_params=pltpu.CompilerParams(
                dimension_semantics=("parallel", "parallel")),
        ))
    out = _CONV3_CACHE[key](xf, w9, bias)
    out = out.reshape(B, Ho, Wp, N)[:, :, :Wo, :]    # drop the Wp-Wo junk columns
    return out


# =============================================================================
# Pallas kernel 3 & 4: max pool (3x3 / s2 / p1) and global average pool.
# =============================================================================

_POOL_CACHE = {}


def maxpool_3x3_s2_p1(x):
    """x: NHWC (bf16). PyTorch MaxPool2d(3, stride=2, padding=1) semantics."""
    xp = jnp.pad(x, ((0, 0), (1, 1), (1, 1), (0, 0)), constant_values=-jnp.inf)
    B, Hp, Wp, C = xp.shape
    Hd, Wd = Hp - 2, Wp - 2
    key = ("maxpool", xp.shape, jnp.dtype(x.dtype).name)
    if key not in _POOL_CACHE:
        def kernel(x_ref, o_ref):
            xv = x_ref[0]
            m = xv[0:Hd, 0:Wd, :]
            for di in range(3):
                for dj in range(3):
                    if di == 0 and dj == 0:
                        continue
                    m = jnp.maximum(m, xv[di:di + Hd, dj:dj + Wd, :])
            o_ref[0] = m

        _POOL_CACHE[key] = jax.jit(pl.pallas_call(
            kernel,
            out_shape=jax.ShapeDtypeStruct((B, Hd, Wd, C), x.dtype),
            grid=(B,),
            in_specs=[pl.BlockSpec((1, Hp, Wp, C), lambda b: (b, 0, 0, 0))],
            out_specs=pl.BlockSpec((1, Hd, Wd, C), lambda b: (b, 0, 0, 0)),
            compiler_params=pltpu.CompilerParams(dimension_semantics=("parallel",)),
        ))
    dense = _POOL_CACHE[key](xp)
    # TODO(synk): stride-2 subsample is still an XLA-side strided slice (tiny tensor).
    return dense[:, ::2, ::2, :]


def global_avgpool(x):
    """x: NHWC (bf16) -> [B, C] f32 (AdaptiveAvgPool2d((1,1)) + flatten)."""
    B, H, W, C = x.shape
    hw = H * W
    xf = x.reshape(B, hw, C)
    key = ("avgpool", xf.shape, jnp.dtype(x.dtype).name)
    if key not in _POOL_CACHE:
        def kernel(x_ref, o_ref):
            o_ref[...] = jnp.sum(x_ref[...].astype(jnp.float32), axis=1) * (1.0 / hw)

        _POOL_CACHE[key] = jax.jit(pl.pallas_call(
            kernel, out_shape=jax.ShapeDtypeStruct((B, C), jnp.float32)))
    return _POOL_CACHE[key](xf)


# =============================================================================
# Convolution glue
# =============================================================================

def im2col(x, k, stride, pad):
    if pad:
        x = jnp.pad(x, ((0, 0), (pad, pad), (pad, pad), (0, 0)))
    B, H, W, C = x.shape
    Ho = (H - k) // stride + 1
    Wo = (W - k) // stride + 1
    cols = []
    for di in range(k):
        for dj in range(k):
            cols.append(x[:, di:di + (Ho - 1) * stride + 1:stride,
                          dj:dj + (Wo - 1) * stride + 1:stride, :])
    patches = jnp.concatenate(cols, axis=-1)               # [B, Ho, Wo, k*k*C]
    return patches.reshape(B * Ho * Wo, k * k * C), Ho, Wo


def conv_im2col(x, wmat, bias, k, stride, pad, relu):
    """Fallback path (7x7 stem and the three stride-2 3x3 convs)."""
    B = x.shape[0]
    N = wmat.shape[1]
    patches, Ho, Wo = im2col(x, k, stride, pad)
    out = fused_matmul(patches, wmat, bias, relu=relu)
    return out.reshape(B, Ho, Wo, N)


def conv1x1_bn(x, p, stride=1, relu=True, residual=None):
    if stride > 1:
        x = x[:, ::stride, ::stride, :]
    B, H, W, C = x.shape
    N = p["w"].shape[1]
    a = x.reshape(B * H * W, C)
    res2d = residual.reshape(B * H * W, N) if residual is not None else None
    out = fused_matmul(a, p["w"], p["bias"], res=res2d, relu=relu)
    return out.reshape(B, H, W, N)


# =============================================================================
# Deterministic parameter construction (ResNet-101: Bottleneck, layers [3,4,23,3])
#   BN is folded in eval mode; the scale is folded into the weight columns.
# =============================================================================

def make_conv_bn_params(rng, cin, cout, k, form):
    std = math.sqrt(2.0 / (cout * k * k))                    # kaiming_normal_(fan_out, relu)
    w = rng.normal(0.0, std, size=(cout, cin, k, k)).astype(np.float32)
    gamma = (1.0 + 0.1 * rng.standard_normal(cout)).astype(np.float32)
    beta = (0.05 * rng.standard_normal(cout)).astype(np.float32)
    r_mean = np.zeros(cout, np.float32)
    r_var = np.ones(cout, np.float32)
    scale = gamma / np.sqrt(r_var + BN_EPS)
    bias = beta - r_mean * scale
    w_khwc = np.transpose(w, (2, 3, 1, 0))                   # (k, k, cin, cout)
    w_folded = w_khwc * scale[None, None, None, :]           # fold BN scale into weights
    p = {"bias": jnp.asarray(bias.reshape(1, -1))}           # f32
    if form == "1x1":
        p["w"] = jnp.asarray(w_folded.reshape(cin, cout), dtype=jnp.bfloat16)
    elif form == "taps":                                     # 3x3 stride-1 direct conv
        p["w9"] = jnp.asarray(w_folded.reshape(k * k, cin, cout), dtype=jnp.bfloat16)
    else:                                                    # im2col matrix, K order (di, dj, cin)
        p["wmat"] = jnp.asarray(w_folded.reshape(k * k * cin, cout), dtype=jnp.bfloat16)
    return p


def build_resnet101_params(num_classes, seed=0):
    rng = np.random.default_rng(seed)
    params = {"conv1": make_conv_bn_params(rng, 3, 64, 7, form="im2col")}

    cfg = [(64, 3, 1), (128, 4, 2), (256, 23, 2), (512, 3, 2)]   # Bottleneck [3,4,23,3]
    expansion = 4
    inplanes = 64
    layers = []
    for planes, blocks, stride in cfg:
        blk_list = []
        for b in range(blocks):
            s = stride if b == 0 else 1
            has_ds = (b == 0) and (s != 1 or inplanes != planes * expansion)
            width = planes
            bp = {
                "c1": make_conv_bn_params(rng, inplanes, width, 1, form="1x1"),
                "c2": make_conv_bn_params(rng, width, width, 3,
                                          form="taps" if s == 1 else "im2col"),
                "c3": make_conv_bn_params(rng, width, planes * expansion, 1, form="1x1"),
            }
            if has_ds:
                bp["ds"] = make_conv_bn_params(rng, inplanes, planes * expansion, 1, form="1x1")
            blk_list.append(bp)
            inplanes = planes * expansion
        layers.append(blk_list)
    params["layers"] = layers

    fan_in = 512 * expansion
    bound = 1.0 / math.sqrt(fan_in)
    fc_w = rng.uniform(-bound, bound, size=(num_classes, fan_in)).astype(np.float32)
    fc_b = rng.uniform(-bound, bound, size=(num_classes,)).astype(np.float32)
    params["fc_w"] = jnp.asarray(fc_w.T, dtype=jnp.bfloat16)      # [2048, num_classes]
    params["fc_b"] = jnp.asarray(fc_b.reshape(1, -1))             # f32
    return params


# =============================================================================
# Forward pass
# =============================================================================

def bottleneck_forward(x, bp, stride):
    identity = x
    out = conv1x1_bn(x, bp["c1"], stride=1, relu=True)
    c2 = bp["c2"]
    if "w9" in c2:                                  # 3x3 stride-1: direct in-kernel tap conv
        out = conv3x3_s1(out, c2["w9"], c2["bias"], relu=True)
    else:                                           # 3x3 stride-2: im2col fallback (3 convs total)
        out = conv_im2col(out, c2["wmat"], c2["bias"], k=3, stride=stride, pad=1, relu=True)
    if "ds" in bp:
        identity = conv1x1_bn(x, bp["ds"], stride=stride, relu=False)
    # conv3 + bn3 + residual add + relu fused in one Pallas kernel
    out = conv1x1_bn(out, bp["c3"], stride=1, relu=True, residual=identity)
    return out


def resnet101_forward(x_nchw, params):
    x = jnp.transpose(x_nchw, (0, 2, 3, 1)).astype(jnp.bfloat16)    # NCHW -> NHWC, bf16
    x = conv_im2col(x, params["conv1"]["wmat"], params["conv1"]["bias"],
                    k=7, stride=2, pad=3, relu=True)
    x = maxpool_3x3_s2_p1(x)
    for li, layer in enumerate(params["layers"]):
        first_stride = 1 if li == 0 else 2
        for bi, bp in enumerate(layer):
            s = first_stride if bi == 0 else 1
            x = bottleneck_forward(x, bp, s)
    feat = global_avgpool(x)                                        # [B, 2048] f32
    logits = fused_matmul(feat.astype(jnp.bfloat16), params["fc_w"], params["fc_b"],
                          relu=False, out_dtype=jnp.float32)
    return logits


def emonet_resnet101_forward(waveform, params, length=None):
    """waveform: [B, L] (like the PyTorch module's forward(x, length=None))."""
    mel_spec = compute_mel_spectrogram_batch(np.asarray(waveform))  # [B, 3, T, F], host numpy
    return resnet101_forward(jnp.asarray(mel_spec), params)


# =============================================================================
# Main
# =============================================================================

if __name__ == "__main__":
    # small shapes: batch=2, waveform -> 8 time frames x 321 freq bins -> [2, 3, 8, 321]
    B = 2
    T_FRAMES = 8
    nperseg, step = 640, 320
    wave_len = nperseg + (T_FRAMES - 1) * step          # 2880 samples

    key = jax.random.PRNGKey(0)
    waveform = jax.random.normal(key, (B, wave_len), dtype=jnp.float32)

    params = build_resnet101_params(NUM_CLASSES, seed=0)

    logits = emonet_resnet101_forward(waveform, params)
    logits = jax.block_until_ready(logits)

    assert logits.shape == (B, NUM_CLASSES)
    assert bool(jnp.all(jnp.isfinite(logits)))
    print("KERNEL_OK")
</pallas_src>

<mosaic_0001>
module attributes {stable_mosaic.version = 11 : i64} {
  func.func @kernel(%arg0: i32, %arg1: i32, %arg2: memref<1288x147xbf16, #tpu.memory_space<vmem>>, %arg3: memref<147x64xbf16, #tpu.memory_space<vmem>>, %arg4: memref<1x64xf32, #tpu.memory_space<vmem>>, %arg5: memref<1288x64xbf16, #tpu.memory_space<vmem>>) attributes {dimension_semantics = [#tpu.dimension_semantics<parallel>, #tpu.dimension_semantics<parallel>], iteration_bounds = array<i64: 1, 1>, scalar_prefetch = 0 : i64, scratch_operands = 0 : i64, tpu.core_type = #tpu.core_type<tc>, window_params = [{transform_indices = @transform_0, window_bounds = array<i64: 1288, 147>}, {transform_indices = @transform_1, window_bounds = array<i64: 147, 64>}, {transform_indices = @transform_2, window_bounds = array<i64: 1, 64>}, {transform_indices = @transform_3, window_bounds = array<i64: 1288, 64>}]} {
    %c0 = arith.constant 0 : index
    %c0_0 = arith.constant 0 : index
    %0 = vector.load %arg2[%c0, %c0_0] : memref<1288x147xbf16, #tpu.memory_space<vmem>>, vector<1288x147xbf16>
    %c0_1 = arith.constant 0 : index
    %c0_2 = arith.constant 0 : index
    %1 = vector.load %arg3[%c0_1, %c0_2] : memref<147x64xbf16, #tpu.memory_space<vmem>>, vector<147x64xbf16>
    %cst = arith.constant dense<0.000000e+00> : vector<1288x64xf32>
    %2 = tpu.matmul %0, %1, %cst {dimension_numbers = #tpu.dot_dimension_numbers<[1], [0], [0], [1], [0, 0, 1, 1], [], []>} : vector<1288x147xbf16>, vector<147x64xbf16>, vector<1288x64xf32> -> vector<1288x64xf32>
    %c0_3 = arith.constant 0 : index
    %c0_4 = arith.constant 0 : index
    %3 = vector.load %arg4[%c0_3, %c0_4] : memref<1x64xf32, #tpu.memory_space<vmem>>, vector<1x64xf32>
    %4 = vector.broadcast %3 : vector<1x64xf32> to vector<1288x64xf32>
    %5 = arith.addf %2, %4 : vector<1288x64xf32>
    %cst_5 = arith.constant 0.000000e+00 : f32
    %6 = vector.broadcast %cst_5 : f32 to vector<1288x64xf32>
    %7 = arith.maximumf %5, %6 : vector<1288x64xf32>
    %8 = arith.truncf %7 : vector<1288x64xf32> to vector<1288x64xbf16>
    %c0_6 = arith.constant 0 : index
    %c0_7 = arith.constant 0 : index
    %9 = vector.load %arg5[%c0_6, %c0_7] : memref<1288x64xbf16, #tpu.memory_space<vmem>>, vector<1288x64xbf16>
    tpu.vector_store %arg5[%c0_6, %c0_7], %8 {strides = array<i32>} : memref<1288x64xbf16, #tpu.memory_space<vmem>>, vector<1288x64xbf16>,
    return
  }
  func.func @transform_0(%arg0: i32, %arg1: i32) -> (i32, i32) {
    %c0_i32 = arith.constant 0 : i32
    %c0_i32_0 = arith.constant 0 : i32
    return %arg0, %c0_i32 : i32, i32
  }
  func.func @transform_1(%arg0: i32, %arg1: i32) -> (i32, i32) {
    %c0_i32 = arith.constant 0 : i32
    %c0_i32_0 = arith.constant 0 : i32
    return %c0_i32, %arg1 : i32, i32
  }
  func.func @transform_2(%arg0: i32, %arg1: i32) -> (i32, i32) {
    %c0_i32 = arith.constant 0 : i32
    %c0_i32_0 = arith.constant 0 : i32
    return %c0_i32, %arg1 : i32, i32
  }
  func.func @transform_3(%arg0: i32, %arg1: i32) -> (i32, i32) {
    %c0_i32 = arith.constant 0 : i32
    return %arg0, %arg1 : i32, i32
  }
}

</mosaic_0001>

<llo_original>
// kernel: tpu_custom_call.1
$region0: #{tpu_custom_call.1}
  #allocation0 [shape = 'u32[]', space=smem, size = 0x4, offset = 0x4, fixed_abs, tag = 'smem constant byte address 0x4 - core index']
  #allocation1 [shape = 'u32[144,128]{1,0:T(1,128)}', space=vmem, size = 0x12000, scoped, tag = 'internal scratch']
  %s0 = inlined_call_operand.vmem [shape: bf16[1288,147], index: 0, kind: input, shape index: {}]
  %s1 = inlined_call_operand.vmem [shape: bf16[147,64], index: 1, kind: input, shape index: {}]
  %s2 = inlined_call_operand.vmem [shape: f32[1,64], index: 2, kind: input, shape index: {}]
  %s3 = inlined_call_operand.vmem [shape: bf16[1288,64], index: 3, kind: output, shape index: {}]
  %s4 = sld [smem:[#allocation0]]
  $region22: #{tpu_custom_call.1} parent=0
    _
  %s6 = ssub.s32 1, %s4
  %s7 = scalar_select 0, %s6, %s4
  // Predicated region
  $region2: #{tpu_custom_call.1} parent=0 // pred_check
    _
  $region3: #{tpu_custom_call.1} parent=0 // pred_check_branch
    %9 = sbr.rel (0) target = $region5
  $region4: #{tpu_custom_call.1} parent=0 // pred_region
    _
  $region5: #{tpu_custom_call.1} parent=0 // pred_fallthru
    _
  // Predicated region
  $region6: #{tpu_custom_call.1} parent=0 // pred_check
    _
  $region7: #{tpu_custom_call.1} parent=0 // pred_check_branch
    %11 = sbr.rel (0) target = $region9
  $region8: #{tpu_custom_call.1} parent=0 // pred_region
    _
  $region9: #{tpu_custom_call.1} parent=0 // pred_fallthru
    _
  // Predicated region
  $region10: #{tpu_custom_call.1} parent=0 // pred_check
    _
  $region11: #{tpu_custom_call.1} parent=0 // pred_check_branch
    %13 = sbr.rel (0) target = $region13
  $region12: #{tpu_custom_call.1} parent=0 // pred_region
    _
  $region13: #{tpu_custom_call.1} parent=0 // pred_fallthru
    _
  %v15 = vld [vmem:[%s0] sm:$0xff]
  %v16 = vld [vmem:[%s0 + $0x8] sm:$0xff]
  %v17 = vld [vmem:[%s0 + $0x10] sm:$0xff]
  %v18 = vld [vmem:[%s0 + $0x18] sm:$0xff]
  %v19 = vld [vmem:[%s0 + $0x20] sm:$0xff]
  %v20 = vld [vmem:[%s0 + $0x28] sm:$0xff]
  %v21 = vld [vmem:[%s0 + $0x30] sm:$0xff]
  %v22 = vld [vmem:[%s0 + $0x38] sm:$0xff]
  %v23 = vld [vmem:[%s0 + $0x40] sm:$0xff]
  %v24 = vld [vmem:[%s0 + $0x48] sm:$0xff]
  %v25 = vld [vmem:[%s0 + $0x50] sm:$0xff]
  %v26 = vld [vmem:[%s0 + $0x58] sm:$0xff]
  %v27 = vld [vmem:[%s0 + $0x60] sm:$0xff]
  %v28 = vld [vmem:[%s0 + $0x68] sm:$0xff]
  %v29 = vld [vmem:[%s0 + $0x70] sm:$0xff]
  %v30 = vld [vmem:[%s0 + $0x78] sm:$0xff]
  %v31 = vld [vmem:[%s0 + $0x80] sm:$0xff]
  %v32 = vld [vmem:[%s0 + $0x88] sm:$0xff]
  %v33 = vld [vmem:[%s0 + $0x90] sm:$0xff]
  %v34 = vld [vmem:[%s0 + $0x98] sm:$0xff]
  %v35 = vld [vmem:[%s0 + $0xa0] sm:$0xff]
  %v36 = vld [vmem:[%s0 + $0xa8] sm:$0xff]
  %v37 = vld [vmem:[%s0 + $0xb0] sm:$0xff]
  %v38 = vld [vmem:[%s0 + $0xb8] sm:$0xff]
  %v39 = vld [vmem:[%s0 + $0xc0] sm:$0xff]
  %v40 = vld [vmem:[%s0 + $0xc8] sm:$0xff]
  %v41 = vld [vmem:[%s0 + $0xd0] sm:$0xff]
  %v42 = vld [vmem:[%s0 + $0xd8] sm:$0xff]
  %v43 = vld [vmem:[%s0 + $0xe0] sm:$0xff]
  %v44 = vld [vmem:[%s0 + $0xe8] sm:$0xff]
  %v45 = vld [vmem:[%s0 + $0xf0] sm:$0xff]
  %v46 = vld [vmem:[%s0 + $0xf8] sm:$0xff]
  %v47 = vld [vmem:[%s0 + $0x100] sm:$0xff]
  %v48 = vld [vmem:[%s0 + $0x108] sm:$0xff]
  %v49 = vld [vmem:[%s0 + $0x110] sm:$0xff]
  %v50 = vld [vmem:[%s0 + $0x118] sm:$0xff]
  %v51 = vld [vmem:[%s0 + $0x120] sm:$0xff]
  %v52 = vld [vmem:[%s0 + $0x128] sm:$0xff]
  %v53 = vld [vmem:[%s0 + $0x130] sm:$0xff]
  %v54 = vld [vmem:[%s0 + $0x138] sm:$0xff]
  %v55 = vld [vmem:[%s0 + $0x140] sm:$0xff]
  %v56 = vld [vmem:[%s0 + $0x148] sm:$0xff]
  %v57 = vld [vmem:[%s0 + $0x150] sm:$0xff]
  %v58 = vld [vmem:[%s0 + $0x158] sm:$0xff]
  %v59 = vld [vmem:[%s0 + $0x160] sm:$0xff]
  %v60 = vld [vmem:[%s0 + $0x168] sm:$0xff]
  %v61 = vld [vmem:[%s0 + $0x170] sm:$0xff]
  %v62 = vld [vmem:[%s0 + $0x178] sm:$0xff]
  %v63 = vld [vmem:[%s0 + $0x180] sm:$0xff]
  %v64 = vld [vmem:[%s0 + $0x188] sm:$0xff]
  %v65 = vld [vmem:[%s0 + $0x190] sm:$0xff]
  %v66 = vld [vmem:[%s0 + $0x198] sm:$0xff]
  %v67 = vld [vmem:[%s0 + $0x1a0] sm:$0xff]
  %v68 = vld [vmem:[%s0 + $0x1a8] sm:$0xff]
  %v69 = vld [vmem:[%s0 + $0x1b0] sm:$0xff]
  %v70 = vld [vmem:[%s0 + $0x1b8] sm:$0xff]
  %v71 = vld [vmem:[%s0 + $0x1c0] sm:$0xff]
  %v72 = vld [vmem:[%s0 + $0x1c8] sm:$0xff]
  %v73 = vld [vmem:[%s0 + $0x1d0] sm:$0xff]
  %v74 = vld [vmem:[%s0 + $0x1d8] sm:$0xff]
  %v75 = vld [vmem:[%s0 + $0x1e0] sm:$0xff]
  %v76 = vld [vmem:[%s0 + $0x1e8] sm:$0xff]
  %v77 = vld [vmem:[%s0 + $0x1f0] sm:$0xff]
  %v78 = vld [vmem:[%s0 + $0x1f8] sm:$0xff]
  %v79 = vld [vmem:[%s0 + $0x200] sm:$0xff]
  %v80 = vld [vmem:[%s0 + $0x208] sm:$0xff]
  %v81 = vld [vmem:[%s0 + $0x210] sm:$0xff]
  %v82 = vld [vmem:[%s0 + $0x218] sm:$0xff]
  %v83 = vld [vmem:[%s0 + $0x220] sm:$0xff]
  %v84 = vld [vmem:[%s0 + $0x228] sm:$0xff]
  %v85 = vld [vmem:[%s0 + $0x230] sm:$0xff]
  %v86 = vld [vmem:[%s0 + $0x238] sm:$0xff]
  %v87 = vld [vmem:[%s0 + $0x240] sm:$0xff]
  %v88 = vld [vmem:[%s0 + $0x248] sm:$0xff]
  %v89 = vld [vmem:[%s0 + $0x250] sm:$0xff]
  %v90 = vld [vmem:[%s0 + $0x258] sm:$0xff]
  %v91 = vld [vmem:[%s0 + $0x260] sm:$0xff]
  %v92 = vld [vmem:[%s0 + $0x268] sm:$0xff]
  %v93 = vld [vmem:[%s0 + $0x270] sm:$0xff]
  %v94 = vld [vmem:[%s0 + $0x278] sm:$0xff]
  %v95 = vld [vmem:[%s0 + $0x280] sm:$0xff]
  %v96 = vld [vmem:[%s0 + $0x288] sm:$0xff]
  %v97 = vld [vmem:[%s0 + $0x290] sm:$0xff]
  %v98 = vld [vmem:[%s0 + $0x298] sm:$0xff]
  %v99 = vld [vmem:[%s0 + $0x2a0] sm:$0xff]
  %v100 = vld [vmem:[%s0 + $0x2a8] sm:$0xff]
  %v101 = vld [vmem:[%s0 + $0x2b0] sm:$0xff]
  %v102 = vld [vmem:[%s0 + $0x2b8] sm:$0xff]
  %v103 = vld [vmem:[%s0 + $0x2c0] sm:$0xff]
  %v104 = vld [vmem:[%s0 + $0x2c8] sm:$0xff]
  %v105 = vld [vmem:[%s0 + $0x2d0] sm:$0xff]
  %v106 = vld [vmem:[%s0 + $0x2d8] sm:$0xff]
  %v107 = vld [vmem:[%s0 + $0x2e0] sm:$0xff]
  %v108 = vld [vmem:[%s0 + $0x2e8] sm:$0xff]
  %v109 = vld [vmem:[%s0 + $0x2f0] sm:$0xff]
  %v110 = vld [vmem:[%s0 + $0x2f8] sm:$0xff]
  %v111 = vld [vmem:[%s0 + $0x300] sm:$0xff]
  %v112 = vld [vmem:[%s0 + $0x308] sm:$0xff]
  %v113 = vld [vmem:[%s0 + $0x310] sm:$0xff]
  %v114 = vld [vmem:[%s0 + $0x318] sm:$0xff]
  %v115 = vld [vmem:[%s0 + $0x320] sm:$0xff]
  %v116 = vld [vmem:[%s0 + $0x328] sm:$0xff]
  %v117 = vld [vmem:[%s0 + $0x330] sm:$0xff]
  %v118 = vld [vmem:[%s0 + $0x338] sm:$0xff]
  %v119 = vld [vmem:[%s0 + $0x340] sm:$0xff]
  %v120 = vld [vmem:[%s0 + $0x348] sm:$0xff]
  %v121 = vld [vmem:[%s0 + $0x350] sm:$0xff]
  %v122 = vld [vmem:[%s0 + $0x358] sm:$0xff]
  %v123 = vld [vmem:[%s0 + $0x360] sm:$0xff]
  %v124 = vld [vmem:[%s0 + $0x368] sm:$0xff]
  %v125 = vld [vmem:[%s0 + $0x370] sm:$0xff]
  %v126 = vld [vmem:[%s0 + $0x378] sm:$0xff]
  %v127 = vld [vmem:[%s0 + $0x380] sm:$0xff]
  %v128 = vld [vmem:[%s0 + $0x388] sm:$0xff]
  %v129 = vld [vmem:[%s0 + $0x390] sm:$0xff]
  %v130 = vld [vmem:[%s0 + $0x398] sm:$0xff]
  %v131 = vld [vmem:[%s0 + $0x3a0] sm:$0xff]
  %v132 = vld [vmem:[%s0 + $0x3a8] sm:$0xff]
  %v133 = vld [vmem:[%s0 + $0x3b0] sm:$0xff]
  %v134 = vld [vmem:[%s0 + $0x3b8] sm:$0xff]
  %v135 = vld [vmem:[%s0 + $0x3c0] sm:$0xff]
  %v136 = vld [vmem:[%s0 + $0x3c8] sm:$0xff]
  %v137 = vld [vmem:[%s0 + $0x3d0] sm:$0xff]
  %v138 = vld [vmem:[%s0 + $0x3d8] sm:$0xff]
  %v139 = vld [vmem:[%s0 + $0x3e0] sm:$0xff]
  %v140 = vld [vmem:[%s0 + $0x3e8] sm:$0xff]
  %v141 = vld [vmem:[%s0 + $0x3f0] sm:$0xff]
  %v142 = vld [vmem:[%s0 + $0x3f8] sm:$0xff]
  %v143 = vld [vmem:[%s0 + $0x400] sm:$0xff]
  %v144 = vld [vmem:[%s0 + $0x408] sm:$0xff]
  %v145 = vld [vmem:[%s0 + $0x410] sm:$0xff]
  %v146 = vld [vmem:[%s0 + $0x418] sm:$0xff]
  %v147 = vld [vmem:[%s0 + $0x420] sm:$0xff]
  %v148 = vld [vmem:[%s0 + $0x428] sm:$0xff]
  %v149 = vld [vmem:[%s0 + $0x430] sm:$0xff]
  %v150 = vld [vmem:[%s0 + $0x438] sm:$0xff]
  %v151 = vld [vmem:[%s0 + $0x440] sm:$0xff]
  %v152 = vld [vmem:[%s0 + $0x448] sm:$0xff]
  %v153 = vld [vmem:[%s0 + $0x450] sm:$0xff]
  %v154 = vld [vmem:[%s0 + $0x458] sm:$0xff]
  %v155 = vld [vmem:[%s0 + $0x460] sm:$0xff]
  %v156 = vld [vmem:[%s0 + $0x468] sm:$0xff]
  %v157 = vld [vmem:[%s0 + $0x470] sm:$0xff]
  %v158 = vld [vmem:[%s0 + $0x478] sm:$0xff]
  %v159 = vld [vmem:[%s0 + $0x480] sm:$0xff]
  %v160 = vld [vmem:[%s0 + $0x488] sm:$0xff]
  %v161 = vld [vmem:[%s0 + $0x490] sm:$0xff]
  %v162 = vld [vmem:[%s0 + $0x498] sm:$0xff]
  %v163 = vld [vmem:[%s0 + $0x4a0] sm:$0xff]
  %v164 = vld [vmem:[%s0 + $0x4a8] sm:$0xff]
  %v165 = vld [vmem:[%s0 + $0x4b0] sm:$0xff]
  %v166 = vld [vmem:[%s0 + $0x4b8] sm:$0xff]
  %v167 = vld [vmem:[%s0 + $0x4c0] sm:$0xff]
  %v168 = vld [vmem:[%s0 + $0x4c8] sm:$0xff]
  %v169 = vld [vmem:[%s0 + $0x4d0] sm:$0xff]
  %v170 = vld [vmem:[%s0 + $0x4d8] sm:$0xff]
  %v171 = vld [vmem:[%s0 + $0x4e0] sm:$0xff]
  %v172 = vld [vmem:[%s0 + $0x4e8] sm:$0xff]
  %v173 = vld [vmem:[%s0 + $0x4f0] sm:$0xff]
  %v174 = vld [vmem:[%s0 + $0x4f8] sm:$0xff]
  %v175 = vld [vmem:[%s0 + $0x500] sm:$0xff]
  %v176 = vld [vmem:[%s1] sm:$0xf]
  %v177 = vld [vmem:[%s1 + $0x4] sm:$0xf]
  %v178 = vld [vmem:[%s1 + $0x8] sm:$0xf]
  %v179 = vld [vmem:[%s1 + $0xc] sm:$0xf]
  %v180 = vld [vmem:[%s1 + $0x10] sm:$0xf]
  %v181 = vld [vmem:[%s1 + $0x14] sm:$0xf]
  %v182 = vld [vmem:[%s1 + $0x18] sm:$0xf]
  %v183 = vld [vmem:[%s1 + $0x1c] sm:$0xf]
  %v184 = vld [vmem:[%s1 + $0x20] sm:$0xf]
  %v185 = vld [vmem:[%s1 + $0x24] sm:$0xf]
  %v186 = vld [vmem:[%s1 + $0x28] sm:$0xf]
  %v187 = vld [vmem:[%s1 + $0x2c] sm:$0xf]
  %v188 = vld [vmem:[%s1 + $0x30] sm:$0xf]
  %v189 = vld [vmem:[%s1 + $0x34] sm:$0xf]
  %v190 = vld [vmem:[%s1 + $0x38] sm:$0xf]
  %v191 = vld [vmem:[%s1 + $0x3c] sm:$0xf]
  %v192 = vld [vmem:[%s1 + $0x40] sm:$0xf]
  %v193 = vld [vmem:[%s1 + $0x44] sm:$0xf]
  %v194 = vld [vmem:[%s1 + $0x48] sm:$0x3]
  %v195 = vld [vmem:[%s2] sm:$0x1]
  %v197 = vlaneseq
  %v198 = vshrl.u32 %v197, 7
  %v199 = vsub.s32 0, %v198
  %v200 = vrot.slane %v195, %v199
  %v363 = vunpack.c.l.b16 %v15
  %v364 = vunpack.c.h.b16 %v15
  %v365 = vunpack.c.l.b16 %v16
  %v366 = vunpack.c.h.b16 %v16
  %v367 = vunpack.c.l.b16 %v17
  %v368 = vunpack.c.h.b16 %v17
  %v369 = vunpack.c.l.b16 %v18
  %v370 = vunpack.c.h.b16 %v18
  %v371 = vunpack.c.l.b16 %v19
  %v372 = vunpack.c.h.b16 %v19
  %v373 = vunpack.c.l.b16 %v20
  %v374 = vunpack.c.h.b16 %v20
  %v375 = vunpack.c.l.b16 %v21
  %v376 = vunpack.c.h.b16 %v21
  %v377 = vunpack.c.l.b16 %v22
  %v378 = vunpack.c.h.b16 %v22
  %v379 = vunpack.c.l.b16 %v23
  %v380 = vunpack.c.h.b16 %v23
  %v381 = vunpack.c.l.b16 %v24
  %v382 = vunpack.c.h.b16 %v24
  %v383 = vunpack.c.l.b16 %v25
  %v384 = vunpack.c.h.b16 %v25
  %v385 = vunpack.c.l.b16 %v26
  %v386 = vunpack.c.h.b16 %v26
  %v387 = vunpack.c.l.b16 %v27
  %v388 = vunpack.c.h.b16 %v27
  %v389 = vunpack.c.l.b16 %v28
  %v390 = vunpack.c.h.b16 %v28
  %v391 = vunpack.c.l.b16 %v29
  %v392 = vunpack.c.h.b16 %v29
  %v393 = vunpack.c.l.b16 %v30
  %v394 = vunpack.c.h.b16 %v30
  %v395 = vunpack.c.l.b16 %v31
  %v396 = vunpack.c.h.b16 %v31
  %v397 = vunpack.c.l.b16 %v32
  %v398 = vunpack.c.h.b16 %v32
  %v399 = vunpack.c.l.b16 %v33
  %v400 = vunpack.c.h.b16 %v33
  %v401 = vunpack.c.l.b16 %v34
  %v402 = vunpack.c.h.b16 %v34
  %v403 = vunpack.c.l.b16 %v35
  %v404 = vunpack.c.h.b16 %v35
  %v405 = vunpack.c.l.b16 %v36
  %v406 = vunpack.c.h.b16 %v36
  %v407 = vunpack.c.l.b16 %v37
  %v408 = vunpack.c.h.b16 %v37
  %v409 = vunpack.c.l.b16 %v38
  %v410 = vunpack.c.h.b16 %v38
  %v411 = vunpack.c.l.b16 %v39
  %v412 = vunpack.c.h.b16 %v39
  %v413 = vunpack.c.l.b16 %v40
  %v414 = vunpack.c.h.b16 %v40
  %v415 = vunpack.c.l.b16 %v41
  %v416 = vunpack.c.h.b16 %v41
  %v417 = vunpack.c.l.b16 %v42
  %v418 = vunpack.c.h.b16 %v42
  %v419 = vunpack.c.l.b16 %v43
  %v420 = vunpack.c.h.b16 %v43
  %v421 = vunpack.c.l.b16 %v44
  %v422 = vunpack.c.h.b16 %v44
  %v423 = vunpack.c.l.b16 %v45
  %v424 = vunpack.c.h.b16 %v45
  %v425 = vunpack.c.l.b16 %v46
  %v426 = vunpack.c.h.b16 %v46
  %v427 = vunpack.c.l.b16 %v47
  %v428 = vunpack.c.h.b16 %v47
  %v429 = vunpack.c.l.b16 %v48
  %v430 = vunpack.c.h.b16 %v48
  %v431 = vunpack.c.l.b16 %v49
  %v432 = vunpack.c.h.b16 %v49
  %v433 = vunpack.c.l.b16 %v50
  %v434 = vunpack.c.h.b16 %v50
  %v435 = vunpack.c.l.b16 %v51
  %v436 = vunpack.c.h.b16 %v51
  %v437 = vunpack.c.l.b16 %v52
  %v438 = vunpack.c.h.b16 %v52
  %v439 = vunpack.c.l.b16 %v53
  %v440 = vunpack.c.h.b16 %v53
  %v441 = vunpack.c.l.b16 %v54
  %v442 = vunpack.c.h.b16 %v54
  %v443 = vunpack.c.l.b16 %v55
  %v444 = vunpack.c.h.b16 %v55
  %v445 = vunpack.c.l.b16 %v56
  %v446 = vunpack.c.h.b16 %v56
  %v447 = vunpack.c.l.b16 %v57
  %v448 = vunpack.c.h.b16 %v57
  %v449 = vunpack.c.l.b16 %v58
  %v450 = vunpack.c.h.b16 %v58
  %v451 = vunpack.c.l.b16 %v59
  %v452 = vunpack.c.h.b16 %v59
  %v453 = vunpack.c.l.b16 %v60
  %v454 = vunpack.c.h.b16 %v60
  %v455 = vunpack.c.l.b16 %v61
  %v456 = vunpack.c.h.b16 %v61
  %v457 = vunpack.c.l.b16 %v62
  %v458 = vunpack.c.h.b16 %v62
  %v459 = vunpack.c.l.b16 %v63
  %v460 = vunpack.c.h.b16 %v63
  %v461 = vunpack.c.l.b16 %v64
  %v462 = vunpack.c.h.b16 %v64
  %v463 = vunpack.c.l.b16 %v65
  %v464 = vunpack.c.h.b16 %v65
  %v465 = vunpack.c.l.b16 %v66
  %v466 = vunpack.c.h.b16 %v66
  %v467 = vunpack.c.l.b16 %v67
  %v468 = vunpack.c.h.b16 %v67
  %v469 = vunpack.c.l.b16 %v68
  %v470 = vunpack.c.h.b16 %v68
  %v471 = vunpack.c.l.b16 %v69
  %v472 = vunpack.c.h.b16 %v69
  %v473 = vunpack.c.l.b16 %v70
  %v474 = vunpack.c.h.b16 %v70
  %v475 = vunpack.c.l.b16 %v71
  %v476 = vunpack.c.h.b16 %v71
  %v477 = vunpack.c.l.b16 %v72
  %v478 = vunpack.c.h.b16 %v72
  %v479 = vunpack.c.l.b16 %v73
  %v480 = vunpack.c.h.b16 %v73
  %v481 = vunpack.c.l.b16 %v74
  %v482 = vunpack.c.h.b16 %v74
  %v483 = vunpack.c.l.b16 %v75
  %v484 = vunpack.c.h.b16 %v75
  %v485 = vunpack.c.l.b16 %v76
  %v486 = vunpack.c.h.b16 %v76
  %v487 = vunpack.c.l.b16 %v77
  %v488 = vunpack.c.h.b16 %v77
  %v489 = vunpack.c.l.b16 %v78
  %v490 = vunpack.c.h.b16 %v78
  %v491 = vunpack.c.l.b16 %v79
  %v492 = vunpack.c.h.b16 %v79
  %v493 = vunpack.c.l.b16 %v80
  %v494 = vunpack.c.h.b16 %v80
  %v495 = vunpack.c.l.b16 %v81
  %v496 = vunpack.c.h.b16 %v81
  %v497 = vunpack.c.l.b16 %v82
  %v498 = vunpack.c.h.b16 %v82
  %v499 = vunpack.c.l.b16 %v83
  %v500 = vunpack.c.h.b16 %v83
  %v501 = vunpack.c.l.b16 %v84
  %v502 = vunpack.c.h.b16 %v84
  %v503 = vunpack.c.l.b16 %v85
  %v504 = vunpack.c.h.b16 %v85
  %v505 = vunpack.c.l.b16 %v86
  %v506 = vunpack.c.h.b16 %v86
  %v507 = vunpack.c.l.b16 %v87
  %v508 = vunpack.c.h.b16 %v87
  %v509 = vunpack.c.l.b16 %v88
  %v510 = vunpack.c.h.b16 %v88
  %v511 = vunpack.c.l.b16 %v89
  %v512 = vunpack.c.h.b16 %v89
  %v513 = vunpack.c.l.b16 %v90
  %v514 = vunpack.c.h.b16 %v90
  %v515 = vunpack.c.l.b16 %v91
  %v516 = vunpack.c.h.b16 %v91
  %v517 = vunpack.c.l.b16 %v92
  %v518 = vunpack.c.h.b16 %v92
  %v519 = vunpack.c.l.b16 %v93
  %v520 = vunpack.c.h.b16 %v93
  %v521 = vunpack.c.l.b16 %v94
  %v522 = vunpack.c.h.b16 %v94
  %v523 = vunpack.c.l.b16 %v95
  %v524 = vunpack.c.h.b16 %v95
  %v525 = vunpack.c.l.b16 %v96
  %v526 = vunpack.c.h.b16 %v96
  %v527 = vunpack.c.l.b16 %v97
  %v528 = vunpack.c.h.b16 %v97
  %v529 = vunpack.c.l.b16 %v98
  %v530 = vunpack.c.h.b16 %v98
  %v531 = vunpack.c.l.b16 %v99
  %v532 = vunpack.c.h.b16 %v99
  %v533 = vunpack.c.l.b16 %v100
  %v534 = vunpack.c.h.b16 %v100
  %v535 = vunpack.c.l.b16 %v101
  %v536 = vunpack.c.h.b16 %v101
  %v537 = vunpack.c.l.b16 %v102
  %v538 = vunpack.c.h.b16 %v102
  %v539 = vunpack.c.l.b16 %v103
  %v540 = vunpack.c.h.b16 %v103
  %v541 = vunpack.c.l.b16 %v104
  %v542 = vunpack.c.h.b16 %v104
  %v543 = vunpack.c.l.b16 %v105
  %v544 = vunpack.c.h.b16 %v105
  %v545 = vunpack.c.l.b16 %v106
  %v546 = vunpack.c.h.b16 %v106
  %v547 = vunpack.c.l.b16 %v107
  %v548 = vunpack.c.h.b16 %v107
  %v549 = vunpack.c.l.b16 %v108
  %v550 = vunpack.c.h.b16 %v108
  %v551 = vunpack.c.l.b16 %v109
  %v552 = vunpack.c.h.b16 %v109
  %v553 = vunpack.c.l.b16 %v110
  %v554 = vunpack.c.h.b16 %v110
  %v555 = vunpack.c.l.b16 %v111
  %v556 = vunpack.c.h.b16 %v111
  %v557 = vunpack.c.l.b16 %v112
  %v558 = vunpack.c.h.b16 %v112
  %v559 = vunpack.c.l.b16 %v113
  %v560 = vunpack.c.h.b16 %v113
  %v561 = vunpack.c.l.b16 %v114
  %v562 = vunpack.c.h.b16 %v114
  %v563 = vunpack.c.l.b16 %v115
  %v564 = vunpack.c.h.b16 %v115
  %v565 = vunpack.c.l.b16 %v116
  %v566 = vunpack.c.h.b16 %v116
  %v567 = vunpack.c.l.b16 %v117
  %v568 = vunpack.c.h.b16 %v117
  %v569 = vunpack.c.l.b16 %v118
  %v570 = vunpack.c.h.b16 %v118
  %v571 = vunpack.c.l.b16 %v119
  %v572 = vunpack.c.h.b16 %v119
  %v573 = vunpack.c.l.b16 %v120
  %v574 = vunpack.c.h.b16 %v120
  %v575 = vunpack.c.l.b16 %v121
  %v576 = vunpack.c.h.b16 %v121
  %v577 = vunpack.c.l.b16 %v122
  %v578 = vunpack.c.h.b16 %v122
  %v579 = vunpack.c.l.b16 %v123
  %v580 = vunpack.c.h.b16 %v123
  %v581 = vunpack.c.l.b16 %v124
  %v582 = vunpack.c.h.b16 %v124
  %v583 = vunpack.c.l.b16 %v125
  %v584 = vunpack.c.h.b16 %v125
  %v585 = vunpack.c.l.b16 %v126
  %v586 = vunpack.c.h.b16 %v126
  %v587 = vunpack.c.l.b16 %v127
  %v588 = vunpack.c.h.b16 %v127
  %v589 = vunpack.c.l.b16 %v128
  %v590 = vunpack.c.h.b16 %v128
  %v591 = vunpack.c.l.b16 %v129
  %v592 = vunpack.c.h.b16 %v129
  %v593 = vunpack.c.l.b16 %v130
  %v594 = vunpack.c.h.b16 %v130
  %v595 = vunpack.c.l.b16 %v131
  %v596 = vunpack.c.h.b16 %v131
  %v597 = vunpack.c.l.b16 %v132
  %v598 = vunpack.c.h.b16 %v132
  %v599 = vunpack.c.l.b16 %v133
  %v600 = vunpack.c.h.b16 %v133
  %v601 = vunpack.c.l.b16 %v134
  %v602 = vunpack.c.h.b16 %v134
  %v603 = vunpack.c.l.b16 %v135
  %v604 = vunpack.c.h.b16 %v135
  %v605 = vunpack.c.l.b16 %v136
  %v606 = vunpack.c.h.b16 %v136
  %v607 = vunpack.c.l.b16 %v137
  %v608 = vunpack.c.h.b16 %v137
  %v609 = vunpack.c.l.b16 %v138
  %v610 = vunpack.c.h.b16 %v138
  %v611 = vunpack.c.l.b16 %v139
  %v612 = vunpack.c.h.b16 %v139
  %v613 = vunpack.c.l.b16 %v140
  %v614 = vunpack.c.h.b16 %v140
  %v615 = vunpack.c.l.b16 %v141
  %v616 = vunpack.c.h.b16 %v141
  %v617 = vunpack.c.l.b16 %v142
  %v618 = vunpack.c.h.b16 %v142
  %v619 = vunpack.c.l.b16 %v143
  %v620 = vunpack.c.h.b16 %v143
  %v621 = vunpack.c.l.b16 %v144
  %v622 = vunpack.c.h.b16 %v144
  %v623 = vunpack.c.l.b16 %v145
  %v624 = vunpack.c.h.b16 %v145
  %v625 = vunpack.c.l.b16 %v146
  %v626 = vunpack.c.h.b16 %v146
  %v627 = vunpack.c.l.b16 %v147
  %v628 = vunpack.c.h.b16 %v147
  %v629 = vunpack.c.l.b16 %v148
  %v630 = vunpack.c.h.b16 %v148
  %v631 = vunpack.c.l.b16 %v149
  %v632 = vunpack.c.h.b16 %v149
  %v633 = vunpack.c.l.b16 %v150
  %v634 = vunpack.c.h.b16 %v150
  %v635 = vunpack.c.l.b16 %v151
  %v636 = vunpack.c.h.b16 %v151
  %v637 = vunpack.c.l.b16 %v152
  %v638 = vunpack.c.h.b16 %v152
  %v639 = vunpack.c.l.b16 %v153
  %v640 = vunpack.c.h.b16 %v153
  %v641 = vunpack.c.l.b16 %v154
  %v642 = vunpack.c.h.b16 %v154
  %v643 = vunpack.c.l.b16 %v155
  %v644 = vunpack.c.h.b16 %v155
  %v645 = vunpack.c.l.b16 %v156
  %v646 = vunpack.c.h.b16 %v156
  %v647 = vunpack.c.l.b16 %v157
  %v648 = vunpack.c.h.b16 %v157
  %v649 = vunpack.c.l.b16 %v158
  %v650 = vunpack.c.h.b16 %v158
  %v651 = vunpack.c.l.b16 %v159
  %v652 = vunpack.c.h.b16 %v159
  %v653 = vunpack.c.l.b16 %v160
  %v654 = vunpack.c.h.b16 %v160
  %v655 = vunpack.c.l.b16 %v161
  %v656 = vunpack.c.h.b16 %v161
  %v657 = vunpack.c.l.b16 %v162
  %v658 = vunpack.c.h.b16 %v162
  %v659 = vunpack.c.l.b16 %v163
  %v660 = vunpack.c.h.b16 %v163
  %v661 = vunpack.c.l.b16 %v164
  %v662 = vunpack.c.h.b16 %v164
  %v663 = vunpack.c.l.b16 %v165
  %v664 = vunpack.c.h.b16 %v165
  %v665 = vunpack.c.l.b16 %v166
  %v666 = vunpack.c.h.b16 %v166
  %v667 = vunpack.c.l.b16 %v167
  %v668 = vunpack.c.h.b16 %v167
  %v669 = vunpack.c.l.b16 %v168
  %v670 = vunpack.c.h.b16 %v168
  %v671 = vunpack.c.l.b16 %v169
  %v672 = vunpack.c.h.b16 %v169
  %v673 = vunpack.c.l.b16 %v170
  %v674 = vunpack.c.h.b16 %v170
  %v675 = vunpack.c.l.b16 %v171
  %v676 = vunpack.c.h.b16 %v171
  %v677 = vunpack.c.l.b16 %v172
  %v678 = vunpack.c.h.b16 %v172
  %v679 = vunpack.c.l.b16 %v173
  %v680 = vunpack.c.h.b16 %v173
  %v681 = vunpack.c.l.b16 %v174
  %v682 = vunpack.c.h.b16 %v174
  %v683 = vunpack.c.l.b16 %v175
  %v684 = vunpack.c.h.b16 %v175
  %v685 = vpack.c.b16 %v365, %v363
  %v686 = vpack.c.b16 %v366, %v364
  %v687 = vpack.c.b16 %v369, %v367
  %v688 = vpack.c.b16 %v370, %v368
  %v689 = vpack.c.b16 %v373, %v371
  %v690 = vpack.c.b16 %v374, %v372
  %v691 = vpack.c.b16 %v377, %v375
  %v692 = vpack.c.b16 %v378, %v376
  %v693 = vpack.c.b16 %v381, %v379
  %v694 = vpack.c.b16 %v382, %v380
  %v695 = vpack.c.b16 %v385, %v383
  %v696 = vpack.c.b16 %v386, %v384
  %v697 = vpack.c.b16 %v389, %v387
  %v698 = vpack.c.b16 %v390, %v388
  %v699 = vpack.c.b16 %v393, %v391
  %v700 = vpack.c.b16 %v394, %v392
  %v701 = vpack.c.b16 %v397, %v395
  %v702 = vpack.c.b16 %v398, %v396
  %v703 = vpack.c.b16 %v401, %v399
  %v704 = vpack.c.b16 %v402, %v400
  %v705 = vpack.c.b16 %v405, %v403
  %v706 = vpack.c.b16 %v406, %v404
  %v707 = vpack.c.b16 %v409, %v407
  %v708 = vpack.c.b16 %v410, %v408
  %v709 = vpack.c.b16 %v413, %v411
  %v710 = vpack.c.b16 %v414, %v412
  %v711 = vpack.c.b16 %v417, %v415
  %v712 = vpack.c.b16 %v418, %v416
  %v713 = vpack.c.b16 %v421, %v419
  %v714 = vpack.c.b16 %v422, %v420
  %v715 = vpack.c.b16 %v425, %v423
  %v716 = vpack.c.b16 %v426, %v424
  %v717 = vpack.c.b16 %v429, %v427
  %v718 = vpack.c.b16 %v430, %v428
  %v719 = vpack.c.b16 %v433, %v431
  %v720 = vpack.c.b16 %v434, %v432
  %v721 = vpack.c.b16 %v437, %v435
  %v722 = vpack.c.b16 %v438, %v436
  %v723 = vpack.c.b16 %v441, %v439
  %v724 = vpack.c.b16 %v442, %v440
  %v725 = vpack.c.b16 %v445, %v443
  %v726 = vpack.c.b16 %v446, %v444
  %v727 = vpack.c.b16 %v449, %v447
  %v728 = vpack.c.b16 %v450, %v448
  %v729 = vpack.c.b16 %v453, %v451
  %v730 = vpack.c.b16 %v454, %v452
  %v731 = vpack.c.b16 %v457, %v455
  %v732 = vpack.c.b16 %v458, %v456
  %v733 = vpack.c.b16 %v461, %v459
  %v734 = vpack.c.b16 %v462, %v460
  %v735 = vpack.c.b16 %v465, %v463
  %v736 = vpack.c.b16 %v466, %v464
  %v737 = vpack.c.b16 %v469, %v467
  %v738 = vpack.c.b16 %v470, %v468
  %v739 = vpack.c.b16 %v473, %v471
  %v740 = vpack.c.b16 %v474, %v472
  %v741 = vpack.c.b16 %v477, %v475
  %v742 = vpack.c.b16 %v478, %v476
  %v743 = vpack.c.b16 %v481, %v479
  %v744 = vpack.c.b16 %v482, %v480
  %v745 = vpack.c.b16 %v485, %v483
  %v746 = vpack.c.b16 %v486, %v484
  %v747 = vpack.c.b16 %v489, %v487
  %v748 = vpack.c.b16 %v490, %v488
  %v749 = vpack.c.b16 %v493, %v491
  %v750 = vpack.c.b16 %v494, %v492
  %v751 = vpack.c.b16 %v497, %v495
  %v752 = vpack.c.b16 %v498, %v496
  %v753 = vpack.c.b16 %v501, %v499
  %v754 = vpack.c.b16 %v502, %v500
  %v755 = vpack.c.b16 %v505, %v503
  %v756 = vpack.c.b16 %v506, %v504
  %v757 = vpack.c.b16 %v509, %v507
  %v758 = vpack.c.b16 %v510, %v508
  %v759 = vpack.c.b16 %v513, %v511
  %v760 = vpack.c.b16 %v514, %v512
  %v761 = vpack.c.b16 %v517, %v515
  %v762 = vpack.c.b16 %v518, %v516
  %v763 = vpack.c.b16 %v521, %v519
  %v764 = vpack.c.b16 %v522, %v520
  %v765 = vpack.c.b16 %v525, %v523
  %v766 = vpack.c.b16 %v526, %v524
  %v767 = vpack.c.b16 %v529, %v527
  %v768 = vpack.c.b16 %v530, %v528
  %v769 = vpack.c.b16 %v533, %v531
  %v770 = vpack.c.b16 %v534, %v532
  %v771 = vpack.c.b16 %v537, %v535
  %v772 = vpack.c.b16 %v538, %v536
  %v773 = vpack.c.b16 %v541, %v539
  %v774 = vpack.c.b16 %v542, %v540
  %v775 = vpack.c.b16 %v545, %v543
  %v776 = vpack.c.b16 %v546, %v544
  %v777 = vpack.c.b16 %v549, %v547
  %v778 = vpack.c.b16 %v550, %v548
  %v779 = vpack.c.b16 %v553, %v551
  %v780 = vpack.c.b16 %v554, %v552
  %v781 = vpack.c.b16 %v557, %v555
  %v782 = vpack.c.b16 %v558, %v556
  %v783 = vpack.c.b16 %v561, %v559
  %v784 = vpack.c.b16 %v562, %v560
  %v785 = vpack.c.b16 %v565, %v563
  %v786 = vpack.c.b16 %v566, %v564
  %v787 = vpack.c.b16 %v569, %v567
  %v788 = vpack.c.b16 %v570, %v568
  %v789 = vpack.c.b16 %v573, %v571
  %v790 = vpack.c.b16 %v574, %v572
  %v791 = vpack.c.b16 %v577, %v575
  %v792 = vpack.c.b16 %v578, %v576
  %v793 = vpack.c.b16 %v581, %v579
  %v794 = vpack.c.b16 %v582, %v580
  %v795 = vpack.c.b16 %v585, %v583
  %v796 = vpack.c.b16 %v586, %v584
  %v797 = vpack.c.b16 %v589, %v587
  %v798 = vpack.c.b16 %v590, %v588
  %v799 = vpack.c.b16 %v593, %v591
  %v800 = vpack.c.b16 %v594, %v592
  %v801 = vpack.c.b16 %v597, %v595
  %v802 = vpack.c.b16 %v598, %v596
  %v803 = vpack.c.b16 %v601, %v599
  %v804 = vpack.c.b16 %v602, %v600
  %v805 = vpack.c.b16 %v605, %v603
  %v806 = vpack.c.b16 %v606, %v604
  %v807 = vpack.c.b16 %v609, %v607
  %v808 = vpack.c.b16 %v610, %v608
  %v809 = vpack.c.b16 %v613, %v611
  %v810 = vpack.c.b16 %v614, %v612
  %v811 = vpack.c.b16 %v617, %v615
  %v812 = vpack.c.b16 %v618, %v616
  %v813 = vpack.c.b16 %v621, %v619
  %v814 = vpack.c.b16 %v622, %v620
  %v815 = vpack.c.b16 %v625, %v623
  %v816 = vpack.c.b16 %v626, %v624
  %v817 = vpack.c.b16 %v629, %v627
  %v818 = vpack.c.b16 %v630, %v628
  %v819 = vpack.c.b16 %v633, %v631
  %v820 = vpack.c.b16 %v634, %v632
  %v821 = vpack.c.b16 %v637, %v635
  %v822 = vpack.c.b16 %v638, %v636
  %v823 = vpack.c.b16 %v641, %v639
  %v824 = vpack.c.b16 %v642, %v640
  %v825 = vpack.c.b16 %v645, %v643
  %v826 = vpack.c.b16 %v646, %v644
  %v827 = vpack.c.b16 %v649, %v647
  %v828 = vpack.c.b16 %v650, %v648
  %v829 = vpack.c.b16 %v653, %v651
  %v830 = vpack.c.b16 %v654, %v652
  %v831 = vpack.c.b16 %v657, %v655
  %v832 = vpack.c.b16 %v658, %v656
  %v833 = vpack.c.b16 %v661, %v659
  %v834 = vpack.c.b16 %v662, %v660
  %v835 = vpack.c.b16 %v665, %v663
  %v836 = vpack.c.b16 %v666, %v664
  %v837 = vpack.c.b16 %v669, %v667
  %v838 = vpack.c.b16 %v670, %v668
  %v839 = vpack.c.b16 %v673, %v671
  %v840 = vpack.c.b16 %v674, %v672
  %v841 = vpack.c.b16 %v677, %v675
  %v842 = vpack.c.b16 %v678, %v676
  %v843 = vpack.c.b16 %v681, %v679
  %v844 = vpack.c.b16 %v682, %v680
  %v845 = vpack.c.b16 %v683, %v683
  %v846 = vpack.c.b16 %v684, %v684
  %v947 = vunpack.c.l.b16 %v176
  %v948 = vunpack.c.l.b16 %v177
  %v949 = vunpack.c.l.b16 %v178
  %v950 = vunpack.c.l.b16 %v179
  %v951 = vunpack.c.l.b16 %v180
  %v952 = vunpack.c.l.b16 %v181
  %v953 = vunpack.c.l.b16 %v182
  %v954 = vunpack.c.l.b16 %v183
  %v955 = vunpack.c.l.b16 %v184
  %v956 = vunpack.c.l.b16 %v185
  %v957 = vunpack.c.l.b16 %v186
  %v958 = vunpack.c.l.b16 %v187
  %v959 = vunpack.c.l.b16 %v188
  %v960 = vunpack.c.l.b16 %v189
  %v961 = vunpack.c.l.b16 %v190
  %v962 = vunpack.c.l.b16 %v191
  %v963 = vunpack.c.l.b16 %v192
  %v964 = vunpack.c.l.b16 %v193
  %v965 = vunpack.c.l.b16 %v194
  %v966 = vpack.c.b16 %v948, %v947
  %v967 = vpack.c.b16 %v950, %v949
  %v968 = vpack.c.b16 %v952, %v951
  %v969 = vpack.c.b16 %v954, %v953
  %v970 = vpack.c.b16 %v956, %v955
  %v971 = vpack.c.b16 %v958, %v957
  %v972 = vpack.c.b16 %v960, %v959
  %v973 = vpack.c.b16 %v962, %v961
  %v974 = vpack.c.b16 %v964, %v963
  %v975 = vpack.c.b16 %v965, %v965
  %vm985 = vcmask 154624
  %v987 = vsel %vm985, %v686, 0
  %v990 = vsel %vm985, %v688, 0
  %v993 = vsel %vm985, %v690, 0
  %v996 = vsel %vm985, %v692, 0
  %v999 = vsel %vm985, %v694, 0
  %v1002 = vsel %vm985, %v696, 0
  %v1005 = vsel %vm985, %v698, 0
  %v1008 = vsel %vm985, %v700, 0
  %v1011 = vsel %vm985, %v702, 0
  %v1014 = vsel %vm985, %v704, 0
  %v1017 = vsel %vm985, %v706, 0
  %v1020 = vsel %vm985, %v708, 0
  %v1023 = vsel %vm985, %v710, 0
  %v1026 = vsel %vm985, %v712, 0
  %v1029 = vsel %vm985, %v714, 0
  %v1032 = vsel %vm985, %v716, 0
  %v1035 = vsel %vm985, %v718, 0
  %v1038 = vsel %vm985, %v720, 0
  %v1041 = vsel %vm985, %v722, 0
  %v1044 = vsel %vm985, %v724, 0
  %v1047 = vsel %vm985, %v726, 0
  %v1050 = vsel %vm985, %v728, 0
  %v1053 = vsel %vm985, %v730, 0
  %v1056 = vsel %vm985, %v732, 0
  %v1059 = vsel %vm985, %v734, 0
  %v1062 = vsel %vm985, %v736, 0
  %v1065 = vsel %vm985, %v738, 0
  %v1068 = vsel %vm985, %v740, 0
  %v1071 = vsel %vm985, %v742, 0
  %v1074 = vsel %vm985, %v744, 0
  %v1077 = vsel %vm985, %v746, 0
  %v1080 = vsel %vm985, %v748, 0
  %v1083 = vsel %vm985, %v750, 0
  %v1086 = vsel %vm985, %v752, 0
  %v1089 = vsel %vm985, %v754, 0
  %v1092 = vsel %vm985, %v756, 0
  %v1095 = vsel %vm985, %v758, 0
  %v1098 = vsel %vm985, %v760, 0
  %v1101 = vsel %vm985, %v762, 0
  %v1104 = vsel %vm985, %v764, 0
  %v1107 = vsel %vm985, %v766, 0
  %v1110 = vsel %vm985, %v768, 0
  %v1113 = vsel %vm985, %v770, 0
  %v1116 = vsel %vm985, %v772, 0
  %v1119 = vsel %vm985, %v774, 0
  %v1122 = vsel %vm985, %v776, 0
  %v1125 = vsel %vm985, %v778, 0
  %v1128 = vsel %vm985, %v780, 0
  %v1131 = vsel %vm985, %v782, 0
  %v1134 = vsel %vm985, %v784, 0
  %v1137 = vsel %vm985, %v786, 0
  %v1140 = vsel %vm985, %v788, 0
  %v1143 = vsel %vm985, %v790, 0
  %v1146 = vsel %vm985, %v792, 0
  %v1149 = vsel %vm985, %v794, 0
  %v1152 = vsel %vm985, %v796, 0
  %v1155 = vsel %vm985, %v798, 0
  %v1158 = vsel %vm985, %v800, 0
  %v1161 = vsel %vm985, %v802, 0
  %v1164 = vsel %vm985, %v804, 0
  %v1167 = vsel %vm985, %v806, 0
  %v1170 = vsel %vm985, %v808, 0
  %v1173 = vsel %vm985, %v810, 0
  %v1176 = vsel %vm985, %v812, 0
  %v1179 = vsel %vm985, %v814, 0
  %v1182 = vsel %vm985, %v816, 0
  %v1185 = vsel %vm985, %v818, 0
  %v1188 = vsel %vm985, %v820, 0
  %v1191 = vsel %vm985, %v822, 0
  %v1194 = vsel %vm985, %v824, 0
  %v1197 = vsel %vm985, %v826, 0
  %v1200 = vsel %vm985, %v828, 0
  %v1203 = vsel %vm985, %v830, 0
  %v1206 = vsel %vm985, %v832, 0
  %v1209 = vsel %vm985, %v834, 0
  %v1212 = vsel %vm985, %v836, 0
  %v1215 = vsel %vm985, %v838, 0
  %v1218 = vsel %vm985, %v840, 0
  %v1221 = vsel %vm985, %v842, 0
  %v1224 = vsel %vm985, %v844, 0
  %v1227 = vsel %vm985, %v846, 0
  %vm1229 = vcmask 1040384
  %vm1230 = vcmask 1041408
  %v1231 = vsel %vm1229, 4294967295, 65535
  %v1232 = vsel %vm1230, %v1231, 0
  %v1234 = vand.u32 %v975, %v1232
  %1236 = vmatprep.subr.bf16.mxu0 0
  %1237 = vmatpush1.bf16.msra.mxu0 %v966
  %1238 = vmatprep.subr.bf16.mxu0 0
  %1239 = vmatpush1.bf16.msra.mxu0 %v967
  %1240 = vmatprep.subr.bf16.mxu0 0
  %1241 = vmatpush1.bf16.msra.mxu0 %v968
  %1242 = vmatprep.subr.bf16.mxu0 0
  %1243 = vmatpush1.bf16.msra.mxu0 %v969
  %1244 = vmatprep.subr.bf16.mxu0 0
  %1245 = vmatpush1.bf16.msra.mxu0 %v970
  %1246 = vmatprep.subr.bf16.mxu0 0
  %1247 = vmatpush1.bf16.msra.mxu0 %v971
  %1248 = vmatprep.subr.bf16.mxu0 0
  %1249 = vmatpush1.bf16.msra.mxu0 %v972
  %1250 = vmatprep.subr.bf16.mxu0 0
  %1251 = vmatpush1.bf16.msra.mxu0 %v973
  %1252 = vmatprep.subr.bf16.mxu0 0
  %1253 = vmatpush1.bf16.msra.mxu0 %v974
  %1254 = vmatprep.subr.bf16.mxu0 0
  %1255 = vmatpush1.bf16.msra.mxu0 %v1234
  %1256 = vmatprep.subr.bf16.mxu0 0
  %1257 = vmatpush1.bf16.msra.mxu0 0
  %1258 = vmatprep.subr.bf16.mxu0 0
  %1259 = vmatpush1.bf16.msra.mxu0 0
  %1260 = vmatprep.subr.bf16.mxu0 0
  %1261 = vmatpush1.bf16.msra.mxu0 0
  %1262 = vmatprep.subr.bf16.mxu0 0
  %1263 = vmatpush1.bf16.msra.mxu0 0
  %1264 = vmatprep.subr.bf16.mxu0 0
  %1265 = vmatpush1.bf16.msra.mxu0 0
  %1266 = vmatprep.subr.bf16.mxu0 0
  %1267 = vmatpush1.bf16.msra.mxu0 0
  %1268 = vmatprep.mubr.bf16.mxu0 %v987
  %1269 = vmatmul.mubr.bf16.gmra.mrb[0].mxu0 %v685
  %v1270 = vpop.f32.mrb[0].mxu0
  %v1271 = vadd.f32 %v200, %v1270
  %v1272 = vpop.f32.mrb[0].mxu0
  %v1273 = vpop.f32.mrb[0].mxu0
  %v1274 = vadd.f32 %v200, %v1273
  %v1275 = vpop.f32.mrb[0].mxu0
  %1276 = vmatprep.mubr.bf16.mxu0 %v990
  %1277 = vmatmul.mubr.bf16.gmra.mrb[0].mxu0 %v687
  %v1278 = vpop.f32.mrb[0].mxu0
  %v1279 = vadd.f32 %v200, %v1278
  %v1280 = vpop.f32.mrb[0].mxu0
  %v1281 = vpop.f32.mrb[0].mxu0
  %v1282 = vadd.f32 %v200, %v1281
  %v1283 = vpop.f32.mrb[0].mxu0
  %1284 = vmatprep.mubr.bf16.mxu0 %v993
  %1285 = vmatmul.mubr.bf16.gmra.mrb[0].mxu0 %v689
  %v1286 = vpop.f32.mrb[0].mxu0
  %v1287 = vadd.f32 %v200, %v1286
  %v1288 = vpop.f32.mrb[0].mxu0
  %v1289 = vpop.f32.mrb[0].mxu0
  %v1290 = vadd.f32 %v200, %v1289
  %v1291 = vpop.f32.mrb[0].mxu0
  %1292 = vmatprep.mubr.bf16.mxu0 %v996
  %1293 = vmatmul.mubr.bf16.gmra.mrb[0].mxu0 %v691
  %v1294 = vpop.f32.mrb[0].mxu0
  %v1295 = vadd.f32 %v200, %v1294
  %v1296 = vpop.f32.mrb[0].mxu0
  %v1297 = vpop.f32.mrb[0].mxu0
  %v1298 = vadd.f32 %v200, %v1297
  %v1299 = vpop.f32.mrb[0].mxu0
  %1300 = vmatprep.mubr.bf16.mxu0 %v999
  %1301 = vmatmul.mubr.bf16.gmra.mrb[0].mxu0 %v693
  %v1302 = vpop.f32.mrb[0].mxu0
  %v1303 = vadd.f32 %v200, %v1302
  %v1304 = vpop.f32.mrb[0].mxu0
  %v1305 = vpop.f32.mrb[0].mxu0
  %v1306 = vadd.f32 %v200, %v1305
  %v1307 = vpop.f32.mrb[0].mxu0
  %1308 = vmatprep.mubr.bf16.mxu0 %v1002
  %1309 = vmatmul.mubr.bf16.gmra.mrb[0].mxu0 %v695
  %v1310 = vpop.f32.mrb[0].mxu0
  %v1311 = vadd.f32 %v200, %v1310
  %v1312 = vpop.f32.mrb[0].mxu0
  %v1313 = vpop.f32.mrb[0].mxu0
  %v1314 = vadd.f32 %v200, %v1313
  %v1315 = vpop.f32.mrb[0].mxu0
  %1316 = vmatprep.mubr.bf16.mxu0 %v1005
  %1317 = vmatmul.mubr.bf16.gmra.mrb[0].mxu0 %v697
  %v1318 = vpop.f32.mrb[0].mxu0
  %v1319 = vadd.f32 %v200, %v1318
  %v1320 = vpop.f32.mrb[0].mxu0
  %v1321 = vpop.f32.mrb[0].mxu0
  %v1322 = vadd.f32 %v200, %v1321
  %v1323 = vpop.f32.mrb[0].mxu0
  %1324 = vmatprep.mubr.bf16.mxu0 %v1008
  %1325 = vmatmul.mubr.bf16.gmra.mrb[0].mxu0 %v699
  %v1326 = vpop.f32.mrb[0].mxu0
  %v1327 = vadd.f32 %v200, %v1326
  %v1328 = vpop.f32.mrb[0].mxu0
  %v1329 = vpop.f32.mrb[0].mxu0
  %v1330 = vadd.f32 %v200, %v1329
  %v1331 = vpop.f32.mrb[0].mxu0
  %1332 = vmatprep.mubr.bf16.mxu0 %v1011
  %1333 = vmatmul.mubr.bf16.gmra.mrb[0].mxu0 %v701
  %v1334 = vpop.f32.mrb[0].mxu0
  %v1335 = vadd.f32 %v200, %v1334
  %v1336 = vpop.f32.mrb[0].mxu0
  %v1337 = vpop.f32.mrb[0].mxu0
  %v1338 = vadd.f32 %v200, %v1337
  %v1339 = vpop.f32.mrb[0].mxu0
  %1340 = vmatprep.mubr.bf16.mxu0 %v1014
  %1341 = vmatmul.mubr.bf16.gmra.mrb[0].mxu0 %v703
  %v1342 = vpop.f32.mrb[0].mxu0
  %v1343 = vadd.f32 %v200, %v1342
  %v1344 = vpop.f32.mrb[0].mxu0
  %v1345 = vpop.f32.mrb[0].mxu0
  %v1346 = vadd.f32 %v200, %v1345
  %v1347 = vpop.f32.mrb[0].mxu0
  %1348 = vmatprep.mubr.bf16.mxu0 %v1017
  %1349 = vmatmul.mubr.bf16.gmra.mrb[0].mxu0 %v705
  %v1350 = vpop.f32.mrb[0].mxu0
  %v1351 = vadd.f32 %v200, %v1350
  %v1352 = vpop.f32.mrb[0].mxu0
  %v1353 = vpop.f32.mrb[0].mxu0
  %v1354 = vadd.f32 %v200, %v1353
  %v1355 = vpop.f32.mrb[0].mxu0
  %1356 = vmatprep.mubr.bf16.mxu0 %v1020
  %1357 = vmatmul.mubr.bf16.gmra.mrb[0].mxu0 %v707
  %v1358 = vpop.f32.mrb[0].mxu0
  %v1359 = vadd.f32 %v200, %v1358
  %v1360 = vpop.f32.mrb[0].mxu0
  %v1361 = vpop.f32.mrb[0].mxu0
  %v1362 = vadd.f32 %v200, %v1361
  %v1363 = vpop.f32.mrb[0].mxu0
  %1364 = vmatprep.mubr.bf16.mxu0 %v1023
  %1365 = vmatmul.mubr.bf16.gmra.mrb[0].mxu0 %v709
  %v1366 = vpop.f32.mrb[0].mxu0
  %v1367 = vadd.f32 %v200, %v1366
  %v1368 = vpop.f32.mrb[0].mxu0
  %v1369 = vpop.f32.mrb[0].mxu0
  %v1370 = vadd.f32 %v200, %v1369
  %v1371 = vpop.f32.mrb[0].mxu0
  %1372 = vmatprep.mubr.bf16.mxu0 %v1026
  %1373 = vmatmul.mubr.bf16.gmra.mrb[0].mxu0 %v711
  %v1374 = vpop.f32.mrb[0].mxu0
  %v1375 = vadd.f32 %v200, %v1374
  %v1376 = vpop.f32.mrb[0].mxu0
  %v1377 = vpop.f32.mrb[0].mxu0
  %v1378 = vadd.f32 %v200, %v1377
  %v1379 = vpop.f32.mrb[0].mxu0
  %1380 = vmatprep.mubr.bf16.mxu0 %v1029
  %1381 = vmatmul.mubr.bf16.gmra.mrb[0].mxu0 %v713
  %v1382 = vpop.f32.mrb[0].mxu0
  %v1383 = vadd.f32 %v200, %v1382
  %v1384 = vpop.f32.mrb[0].mxu0
  %v1385 = vpop.f32.mrb[0].mxu0
  %v1386 = vadd.f32 %v200, %v1385
  %v1387 = vpop.f32.mrb[0].mxu0
  %1388 = vmatprep.mubr.bf16.mxu0 %v1032
  %1389 = vmatmul.mubr.bf16.gmra.mrb[0].mxu0 %v715
  %v1390 = vpop.f32.mrb[0].mxu0
  %v1391 = vadd.f32 %v200, %v1390
  %v1392 = vpop.f32.mrb[0].mxu0
  %v1393 = vpop.f32.mrb[0].mxu0
  %v1394 = vadd.f32 %v200, %v1393
  %v1395 = vpop.f32.mrb[0].mxu0
  %1396 = vmatprep.mubr.bf16.mxu0 %v1035
  %1397 = vmatmul.mubr.bf16.gmra.mrb[0].mxu0 %v717
  %v1398 = vpop.f32.mrb[0].mxu0
  %v1399 = vadd.f32 %v200, %v1398
  %v1400 = vpop.f32.mrb[0].mxu0
  %v1401 = vpop.f32.mrb[0].mxu0
  %v1402 = vadd.f32 %v200, %v1401
  %v1403 = vpop.f32.mrb[0].mxu0
  %1404 = vmatprep.mubr.bf16.mxu0 %v1038
  %1405 = vmatmul.mubr.bf16.gmra.mrb[0].mxu0 %v719
  %v1406 = vpop.f32.mrb[0].mxu0
  %v1407 = vadd.f32 %v200, %v1406
  %v1408 = vpop.f32.mrb[0].mxu0
  %v1409 = vpop.f32.mrb[0].mxu0
  %v1410 = vadd.f32 %v200, %v1409
  %v1411 = vpop.f32.mrb[0].mxu0
  %1412 = vmatprep.mubr.bf16.mxu0 %v1041
  %1413 = vmatmul.mubr.bf16.gmra.mrb[0].mxu0 %v721
  %v1414 = vpop.f32.mrb[0].mxu0
  %v1415 = vadd.f32 %v200, %v1414
  %v1416 = vpop.f32.mrb[0].mxu0
  %v1417 = vpop.f32.mrb[0].mxu0
  %v1418 = vadd.f32 %v200, %v1417
  %v1419 = vpop.f32.mrb[0].mxu0
  %1420 = vmatprep.mubr.bf16.mxu0 %v1044
  %1421 = vmatmul.mubr.bf16.gmra.mrb[0].mxu0 %v723
  %v1422 = vpop.f32.mrb[0].mxu0
  %v1423 = vadd.f32 %v200, %v1422
  %v1424 = vpop.f32.mrb[0].mxu0
  %v1425 = vpop.f32.mrb[0].mxu0
  %v1426 = vadd.f32 %v200, %v1425
  %v1427 = vpop.f32.mrb[0].mxu0
  %1428 = vmatprep.mubr.bf16.mxu0 %v1047
  %1429 = vmatmul.mubr.bf16.gmra.mrb[0].mxu0 %v725
  %v1430 = vpop.f32.mrb[0].mxu0
  %v1431 = vadd.f32 %v200, %v1430
  %v1432 = vpop.f32.mrb[0].mxu0
  %v1433 = vpop.f32.mrb[0].mxu0
  %v1434 = vadd.f32 %v200, %v1433
  %v1435 = vpop.f32.mrb[0].mxu0
  %1436 = vmatprep.mubr.bf16.mxu0 %v1050
  %1437 = vmatmul.mubr.bf16.gmra.mrb[0].mxu0 %v727
  %v1438 = vpop.f32.mrb[0].mxu0
  %v1439 = vadd.f32 %v200, %v1438
  %v1440 = vpop.f32.mrb[0].mxu0
  %v1441 = vpop.f32.mrb[0].mxu0
  %v1442 = vadd.f32 %v200, %v1441
  %v1443 = vpop.f32.mrb[0].mxu0
  %1444 = vmatprep.mubr.bf16.mxu0 %v1053
  %1445 = vmatmul.mubr.bf16.gmra.mrb[0].mxu0 %v729
  %v1446 = vpop.f32.mrb[0].mxu0
  %v1447 = vadd.f32 %v200, %v1446
  %v1448 = vpop.f32.mrb[0].mxu0
  %v1449 = vpop.f32.mrb[0].mxu0
  %v1450 = vadd.f32 %v200, %v1449
  %v1451 = vpop.f32.mrb[0].mxu0
  %1452 = vmatprep.mubr.bf16.mxu0 %v1056
  %1453 = vmatmul.mubr.bf16.gmra.mrb[0].mxu0 %v731
  %v1454 = vpop.f32.mrb[0].mxu0
  %v1455 = vadd.f32 %v200, %v1454
  %v1456 = vpop.f32.mrb[0].mxu0
  %v1457 = vpop.f32.mrb[0].mxu0
  %v1458 = vadd.f32 %v200, %v1457
  %v1459 = vpop.f32.mrb[0].mxu0
  %1460 = vmatprep.mubr.bf16.mxu0 %v1059
  %1461 = vmatmul.mubr.bf16.gmra.mrb[0].mxu0 %v733
  %v1462 = vpop.f32.mrb[0].mxu0
  %v1463 = vadd.f32 %v200, %v1462
  %v1464 = vpop.f32.mrb[0].mxu0
  %v1465 = vpop.f32.mrb[0].mxu0
  %v1466 = vadd.f32 %v200, %v1465
  %v1467 = vpop.f32.mrb[0].mxu0
  %1468 = vmatprep.mubr.bf16.mxu0 %v1062
  %1469 = vmatmul.mubr.bf16.gmra.mrb[0].mxu0 %v735
  %v1470 = vpop.f32.mrb[0].mxu0
  %v1471 = vadd.f32 %v200, %v1470
  %v1472 = vpop.f32.mrb[0].mxu0
  %v1473 = vpop.f32.mrb[0].mxu0
  %v1474 = vadd.f32 %v200, %v1473
  %v1475 = vpop.f32.mrb[0].mxu0
  %1476 = vmatprep.mubr.bf16.mxu0 %v1065
  %1477 = vmatmul.mubr.bf16.gmra.mrb[0].mxu0 %v737
  %v1478 = vpop.f32.mrb[0].mxu0
  %v1479 = vadd.f32 %v200, %v1478
  %v1480 = vpop.f32.mrb[0].mxu0
  %v1481 = vpop.f32.mrb[0].mxu0
  %v1482 = vadd.f32 %v200, %v1481
  %v1483 = vpop.f32.mrb[0].mxu0
  %1484 = vmatprep.mubr.bf16.mxu0 %v1068
  %1485 = vmatmul.mubr.bf16.gmra.mrb[0].mxu0 %v739
  %v1486 = vpop.f32.mrb[0].mxu0
  %v1487 = vadd.f32 %v200, %v1486
  %v1488 = vpop.f32.mrb[0].mxu0
  %v1489 = vpop.f32.mrb[0].mxu0
  %v1490 = vadd.f32 %v200, %v1489
  %v1491 = vpop.f32.mrb[0].mxu0
  %1492 = vmatprep.mubr.bf16.mxu0 %v1071
  %1493 = vmatmul.mubr.bf16.gmra.mrb[0].mxu0 %v741
  %v1494 = vpop.f32.mrb[0].mxu0
  %v1495 = vadd.f32 %v200, %v1494
  %v1496 = vpop.f32.mrb[0].mxu0
  %v1497 = vpop.f32.mrb[0].mxu0
  %v1498 = vadd.f32 %v200, %v1497
  %v1499 = vpop.f32.mrb[0].mxu0
  %1500 = vmatprep.mubr.bf16.mxu0 %v1074
  %1501 = vmatmul.mubr.bf16.gmra.mrb[0].mxu0 %v743
  %v1502 = vpop.f32.mrb[0].mxu0
  %v1503 = vadd.f32 %v200, %v1502
  %v1504 = vpop.f32.mrb[0].mxu0
  %v1505 = vpop.f32.mrb[0].mxu0
  %v1506 = vadd.f32 %v200, %v1505
  %v1507 = vpop.f32.mrb[0].mxu0
  %1508 = vmatprep.mubr.bf16.mxu0 %v1077
  %1509 = vmatmul.mubr.bf16.gmra.mrb[0].mxu0 %v745
  %v1510 = vpop.f32.mrb[0].mxu0
  %v1511 = vadd.f32 %v200, %v1510
  %v1512 = vpop.f32.mrb[0].mxu0
  %v1513 = vpop.f32.mrb[0].mxu0
  %v1514 = vadd.f32 %v200, %v1513
  %v1515 = vpop.f32.mrb[0].mxu0
  %1516 = vmatprep.mubr.bf16.mxu0 %v1080
  %1517 = vmatmul.mubr.bf16.gmra.mrb[0].mxu0 %v747
  %v1518 = vpop.f32.mrb[0].mxu0
  %v1519 = vadd.f32 %v200, %v1518
  %v1520 = vpop.f32.mrb[0].mxu0
  %v1521 = vpop.f32.mrb[0].mxu0
  %v1522 = vadd.f32 %v200, %v1521
  %v1523 = vpop.f32.mrb[0].mxu0
  %1524 = vmatprep.mubr.bf16.mxu0 %v1083
  %1525 = vmatmul.mubr.bf16.gmra.mrb[0].mxu0 %v749
  %v1526 = vpop.f32.mrb[0].mxu0
  %v1527 = vadd.f32 %v200, %v1526
  %v1528 = vpop.f32.mrb[0].mxu0
  %v1529 = vpop.f32.mrb[0].mxu0
  %v1530 = vadd.f32 %v200, %v1529
  %v1531 = vpop.f32.mrb[0].mxu0
  %1532 = vmatprep.mubr.bf16.mxu0 %v1086
  %1533 = vmatmul.mubr.bf16.gmra.mrb[0].mxu0 %v751
  %v1534 = vpop.f32.mrb[0].mxu0
  %v1535 = vadd.f32 %v200, %v1534
  %v1536 = vpop.f32.mrb[0].mxu0
  %v1537 = vpop.f32.mrb[0].mxu0
  %v1538 = vadd.f32 %v200, %v1537
  %v1539 = vpop.f32.mrb[0].mxu0
  %1540 = vmatprep.mubr.bf16.mxu0 %v1089
  %1541 = vmatmul.mubr.bf16.gmra.mrb[0].mxu0 %v753
  %v1542 = vpop.f32.mrb[0].mxu0
  %v1543 = vadd.f32 %v200, %v1542
  %v1544 = vpop.f32.mrb[0].mxu0
  %v1545 = vpop.f32.mrb[0].mxu0
  %v1546 = vadd.f32 %v200, %v1545
  %v1547 = vpop.f32.mrb[0].mxu0
  %1548 = vmatprep.mubr.bf16.mxu0 %v1092
  %1549 = vmatmul.mubr.bf16.gmra.mrb[0].mxu0 %v755
  %v1550 = vpop.f32.mrb[0].mxu0
  %v1551 = vadd.f32 %v200, %v1550
  %v1552 = vpop.f32.mrb[0].mxu0
  %v1553 = vpop.f32.mrb[0].mxu0
  %v1554 = vadd.f32 %v200, %v1553
  %v1555 = vpop.f32.mrb[0].mxu0
  %1556 = vmatprep.mubr.bf16.mxu0 %v1095
  %1557 = vmatmul.mubr.bf16.gmra.mrb[0].mxu0 %v757
  %v1558 = vpop.f32.mrb[0].mxu0
  %v1559 = vadd.f32 %v200, %v1558
  %v1560 = vpop.f32.mrb[0].mxu0
  %v1561 = vpop.f32.mrb[0].mxu0
  %v1562 = vadd.f32 %v200, %v1561
  %v1563 = vpop.f32.mrb[0].mxu0
  %1564 = vmatprep.mubr.bf16.mxu0 %v1098
  %1565 = vmatmul.mubr.bf16.gmra.mrb[0].mxu0 %v759
  %v1566 = vpop.f32.mrb[0].mxu0
  %v1567 = vadd.f32 %v200, %v1566
  %v1568 = vpop.f32.mrb[0].mxu0
  %v1569 = vpop.f32.mrb[0].mxu0
  %v1570 = vadd.f32 %v200, %v1569
  %v1571 = vpop.f32.mrb[0].mxu0
  %1572 = vmatprep.mubr.bf16.mxu0 %v1101
  %1573 = vmatmul.mubr.bf16.gmra.mrb[0].mxu0 %v761
  %v1574 = vpop.f32.mrb[0].mxu0
  %v1575 = vadd.f32 %v200, %v1574
  %v1576 = vpop.f32.mrb[0].mxu0
  %v1577 = vpop.f32.mrb[0].mxu0
  %v1578 = vadd.f32 %v200, %v1577
  %v1579 = vpop.f32.mrb[0].mxu0
  %1580 = vmatprep.mubr.bf16.mxu0 %v1104
  %1581 = vmatmul.mubr.bf16.gmra.mrb[0].mxu0 %v763
  %v1582 = vpop.f32.mrb[0].mxu0
  %v1583 = vadd.f32 %v200, %v1582
  %v1584 = vpop.f32.mrb[0].mxu0
  %v1585 = vpop.f32.mrb[0].mxu0
  %v1586 = vadd.f32 %v200, %v1585
  %v1587 = vpop.f32.mrb[0].mxu0
  %1588 = vmatprep.mubr.bf16.mxu0 %v1107
  %1589 = vmatmul.mubr.bf16.gmra.mrb[0].mxu0 %v765
  %v1590 = vpop.f32.mrb[0].mxu0
  %v1591 = vadd.f32 %v200, %v1590
  %v1592 = vpop.f32.mrb[0].mxu0
  %v1593 = vpop.f32.mrb[0].mxu0
  %v1594 = vadd.f32 %v200, %v1593
  %v1595 = vpop.f32.mrb[0].mxu0
  %1596 = vmatprep.mubr.bf16.mxu0 %v1110
  %1597 = vmatmul.mubr.bf16.gmra.mrb[0].mxu0 %v767
  %v1598 = vpop.f32.mrb[0].mxu0
  %v1599 = vadd.f32 %v200, %v1598
  %v1600 = vpop.f32.mrb[0].mxu0
  %v1601 = vpop.f32.mrb[0].mxu0
  %v1602 = vadd.f32 %v200, %v1601
  %v1603 = vpop.f32.mrb[0].mxu0
  %1604 = vmatprep.mubr.bf16.mxu0 %v1113
  %1605 = vmatmul.mubr.bf16.gmra.mrb[0].mxu0 %v769
  %v1606 = vpop.f32.mrb[0].mxu0
  %v1607 = vadd.f32 %v200, %v1606
  %v1608 = vpop.f32.mrb[0].mxu0
  %v1609 = vpop.f32.mrb[0].mxu0
  %v1610 = vadd.f32 %v200, %v1609
  %v1611 = vpop.f32.mrb[0].mxu0
  %1612 = vmatprep.mubr.bf16.mxu0 %v1116
  %1613 = vmatmul.mubr.bf16.gmra.mrb[0].mxu0 %v771
  %v1614 = vpop.f32.mrb[0].mxu0
  %v1615 = vadd.f32 %v200, %v1614
  %v1616 = vpop.f32.mrb[0].mxu0
  %v1617 = vpop.f32.mrb[0].mxu0
  %v1618 = vadd.f32 %v200, %v1617
  %v1619 = vpop.f32.mrb[0].mxu0
  %1620 = vmatprep.mubr.bf16.mxu0 %v1119
  %1621 = vmatmul.mubr.bf16.gmra.mrb[0].mxu0 %v773
  %v1622 = vpop.f32.mrb[0].mxu0
  %v1623 = vadd.f32 %v200, %v1622
  %v1624 = vpop.f32.mrb[0].mxu0
  %v1625 = vpop.f32.mrb[0].mxu0
  %v1626 = vadd.f32 %v200, %v1625
  %v1627 = vpop.f32.mrb[0].mxu0
  %1628 = vmatprep.mubr.bf16.mxu0 %v1122
  %1629 = vmatmul.mubr.bf16.gmra.mrb[0].mxu0 %v775
  %v1630 = vpop.f32.mrb[0].mxu0
  %v1631 = vadd.f32 %v200, %v1630
  %v1632 = vpop.f32.mrb[0].mxu0
  %v1633 = vpop.f32.mrb[0].mxu0
  %v1634 = vadd.f32 %v200, %v1633
  %v1635 = vpop.f32.mrb[0].mxu0
  %1636 = vmatprep.mubr.bf16.mxu0 %v1125
  %1637 = vmatmul.mubr.bf16.gmra.mrb[0].mxu0 %v777
  %v1638 = vpop.f32.mrb[0].mxu0
  %v1639 = vadd.f32 %v200, %v1638
  %v1640 = vpop.f32.mrb[0].mxu0
  %v1641 = vpop.f32.mrb[0].mxu0
  %v1642 = vadd.f32 %v200, %v1641
  %v1643 = vpop.f32.mrb[0].mxu0
  %1644 = vmatprep.mubr.bf16.mxu0 %v1128
  %1645 = vmatmul.mubr.bf16.gmra.mrb[0].mxu0 %v779
  %v1646 = vpop.f32.mrb[0].mxu0
  %v1647 = vadd.f32 %v200, %v1646
  %v1648 = vpop.f32.mrb[0].mxu0
  %v1649 = vpop.f32.mrb[0].mxu0
  %v1650 = vadd.f32 %v200, %v1649
  %v1651 = vpop.f32.mrb[0].mxu0
  %1652 = vmatprep.mubr.bf16.mxu0 %v1131
  %1653 = vmatmul.mubr.bf16.gmra.mrb[0].mxu0 %v781
  %v1654 = vpop.f32.mrb[0].mxu0
  %v1655 = vadd.f32 %v200, %v1654
  %v1656 = vpop.f32.mrb[0].mxu0
  %v1657 = vpop.f32.mrb[0].mxu0
  %v1658 = vadd.f32 %v200, %v1657
  %v1659 = vpop.f32.mrb[0].mxu0
  %1660 = vmatprep.mubr.bf16.mxu0 %v1134
  %1661 = vmatmul.mubr.bf16.gmra.mrb[0].mxu0 %v783
  %v1662 = vpop.f32.mrb[0].mxu0
  %v1663 = vadd.f32 %v200, %v1662
  %v1664 = vpop.f32.mrb[0].mxu0
  %v1665 = vpop.f32.mrb[0].mxu0
  %v1666 = vadd.f32 %v200, %v1665
  %v1667 = vpop.f32.mrb[0].mxu0
  %1668 = vmatprep.mubr.bf16.mxu0 %v1137
  %1669 = vmatmul.mubr.bf16.gmra.mrb[0].mxu0 %v785
  %v1670 = vpop.f32.mrb[0].mxu0
  %v1671 = vadd.f32 %v200, %v1670
  %v1672 = vpop.f32.mrb[0].mxu0
  %v1673 = vpop.f32.mrb[0].mxu0
  %v1674 = vadd.f32 %v200, %v1673
  %v1675 = vpop.f32.mrb[0].mxu0
  %1676 = vmatprep.mubr.bf16.mxu0 %v1140
  %1677 = vmatmul.mubr.bf16.gmra.mrb[0].mxu0 %v787
  %v1678 = vpop.f32.mrb[0].mxu0
  %v1679 = vadd.f32 %v200, %v1678
  %v1680 = vpop.f32.mrb[0].mxu0
  %v1681 = vpop.f32.mrb[0].mxu0
  %v1682 = vadd.f32 %v200, %v1681
  %v1683 = vpop.f32.mrb[0].mxu0
  %1684 = vmatprep.mubr.bf16.mxu0 %v1143
  %1685 = vmatmul.mubr.bf16.gmra.mrb[0].mxu0 %v789
  %v1686 = vpop.f32.mrb[0].mxu0
  %v1687 = vadd.f32 %v200, %v1686
  %v1688 = vpop.f32.mrb[0].mxu0
  %v1689 = vpop.f32.mrb[0].mxu0
  %v1690 = vadd.f32 %v200, %v1689
  %v1691 = vpop.f32.mrb[0].mxu0
  %1692 = vmatprep.mubr.bf16.mxu0 %v1146
  %1693 = vmatmul.mubr.bf16.gmra.mrb[0].mxu0 %v791
  %v1694 = vpop.f32.mrb[0].mxu0
  %v1695 = vadd.f32 %v200, %v1694
  %v1696 = vpop.f32.mrb[0].mxu0
  %v1697 = vpop.f32.mrb[0].mxu0
  %v1698 = vadd.f32 %v200, %v1697
  %v1699 = vpop.f32.mrb[0].mxu0
  %1700 = vmatprep.mubr.bf16.mxu0 %v1149
  %1701 = vmatmul.mubr.bf16.gmra.mrb[0].mxu0 %v793
  %v1702 = vpop.f32.mrb[0].mxu0
  %v1703 = vadd.f32 %v200, %v1702
  %v1704 = vpop.f32.mrb[0].mxu0
  %v1705 = vpop.f32.mrb[0].mxu0
  %v1706 = vadd.f32 %v200, %v1705
  %v1707 = vpop.f32.mrb[0].mxu0
  %1708 = vmatprep.mubr.bf16.mxu0 %v1152
  %1709 = vmatmul.mubr.bf16.gmra.mrb[0].mxu0 %v795
  %v1710 = vpop.f32.mrb[0].mxu0
  %v1711 = vadd.f32 %v200, %v1710
  %v1712 = vpop.f32.mrb[0].mxu0
  %v1713 = vpop.f32.mrb[0].mxu0
  %v1714 = vadd.f32 %v200, %v1713
  %v1715 = vpop.f32.mrb[0].mxu0
  %1716 = vmatprep.mubr.bf16.mxu0 %v1155
  %1717 = vmatmul.mubr.bf16.gmra.mrb[0].mxu0 %v797
  %v1718 = vpop.f32.mrb[0].mxu0
  %v1719 = vadd.f32 %v200, %v1718
  %v1720 = vpop.f32.mrb[0].mxu0
  %v1721 = vpop.f32.mrb[0].mxu0
  %v1722 = vadd.f32 %v200, %v1721
  %v1723 = vpop.f32.mrb[0].mxu0
  %1724 = vmatprep.mubr.bf16.mxu0 %v1158
  %1725 = vmatmul.mubr.bf16.gmra.mrb[0].mxu0 %v799
  %v1726 = vpop.f32.mrb[0].mxu0
  %v1727 = vadd.f32 %v200, %v1726
  %v1728 = vpop.f32.mrb[0].mxu0
  %v1729 = vpop.f32.mrb[0].mxu0
  %v1730 = vadd.f32 %v200, %v1729
  %v1731 = vpop.f32.mrb[0].mxu0
  %1732 = vmatprep.mubr.bf16.mxu0 %v1161
  %1733 = vmatmul.mubr.bf16.gmra.mrb[0].mxu0 %v801
  %v1734 = vpop.f32.mrb[0].mxu0
  %v1735 = vadd.f32 %v200, %v1734
  %v1736 = vpop.f32.mrb[0].mxu0
  %v1737 = vpop.f32.mrb[0].mxu0
  %v1738 = vadd.f32 %v200, %v1737
  %v1739 = vpop.f32.mrb[0].mxu0
  %1740 = vmatprep.mubr.bf16.mxu0 %v1164
  %1741 = vmatmul.mubr.bf16.gmra.mrb[0].mxu0 %v803
  %v1742 = vpop.f32.mrb[0].mxu0
  %v1743 = vadd.f32 %v200, %v1742
  %v1744 = vpop.f32.mrb[0].mxu0
  %v1745 = vpop.f32.mrb[0].mxu0
  %v1746 = vadd.f32 %v200, %v1745
  %v1747 = vpop.f32.mrb[0].mxu0
  %1748 = vmatprep.mubr.bf16.mxu0 %v1167
  %1749 = vmatmul.mubr.bf16.gmra.mrb[0].mxu0 %v805
  %v1750 = vpop.f32.mrb[0].mxu0
  %v1751 = vadd.f32 %v200, %v1750
  %v1752 = vpop.f32.mrb[0].mxu0
  %v1753 = vpop.f32.mrb[0].mxu0
  %v1754 = vadd.f32 %v200, %v1753
  %v1755 = vpop.f32.mrb[0].mxu0
  %1756 = vmatprep.mubr.bf16.mxu0 %v1170
  %1757 = vmatmul.mubr.bf16.gmra.mrb[0].mxu0 %v807
  %v1758 = vpop.f32.mrb[0].mxu0
  %v1759 = vadd.f32 %v200, %v1758
  %v1760 = vpop.f32.mrb[0].mxu0
  %v1761 = vpop.f32.mrb[0].mxu0
  %v1762 = vadd.f32 %v200, %v1761
  %v1763 = vpop.f32.mrb[0].mxu0
  %1764 = vmatprep.mubr.bf16.mxu0 %v1173
  %1765 = vmatmul.mubr.bf16.gmra.mrb[0].mxu0 %v809
  %v1766 = vpop.f32.mrb[0].mxu0
  %v1767 = vadd.f32 %v200, %v1766
  %v1768 = vpop.f32.mrb[0].mxu0
  %v1769 = vpop.f32.mrb[0].mxu0
  %v1770 = vadd.f32 %v200, %v1769
  %v1771 = vpop.f32.mrb[0].mxu0
  %1772 = vmatprep.mubr.bf16.mxu0 %v1176
  %1773 = vmatmul.mubr.bf16.gmra.mrb[0].mxu0 %v811
  %v1774 = vpop.f32.mrb[0].mxu0
  %v1775 = vadd.f32 %v200, %v1774
  %v1776 = vpop.f32.mrb[0].mxu0
  %v1777 = vpop.f32.mrb[0].mxu0
  %v1778 = vadd.f32 %v200, %v1777
  %v1779 = vpop.f32.mrb[0].mxu0
  %1780 = vmatprep.mubr.bf16.mxu0 %v1179
  %1781 = vmatmul.mubr.bf16.gmra.mrb[0].mxu0 %v813
  %v1782 = vpop.f32.mrb[0].mxu0
  %v1783 = vadd.f32 %v200, %v1782
  %v1784 = vpop.f32.mrb[0].mxu0
  %v1785 = vpop.f32.mrb[0].mxu0
  %v1786 = vadd.f32 %v200, %v1785
  %v1787 = vpop.f32.mrb[0].mxu0
  %1788 = vmatprep.mubr.bf16.mxu0 %v1182
  %1789 = vmatmul.mubr.bf16.gmra.mrb[0].mxu0 %v815
  %v1790 = vpop.f32.mrb[0].mxu0
  %v1791 = vadd.f32 %v200, %v1790
  %v1792 = vpop.f32.mrb[0].mxu0
  %v1793 = vpop.f32.mrb[0].mxu0
  %v1794 = vadd.f32 %v200, %v1793
  %v1795 = vpop.f32.mrb[0].mxu0
  %1796 = vmatprep.mubr.bf16.mxu0 %v1185
  %1797 = vmatmul.mubr.bf16.gmra.mrb[0].mxu0 %v817
  %v1798 = vpop.f32.mrb[0].mxu0
  %v1799 = vadd.f32 %v200, %v1798
  %v1800 = vpop.f32.mrb[0].mxu0
  %v1801 = vpop.f32.mrb[0].mxu0
  %v1802 = vadd.f32 %v200, %v1801
  %v1803 = vpop.f32.mrb[0].mxu0
  %1804 = vmatprep.mubr.bf16.mxu0 %v1188
  %1805 = vmatmul.mubr.bf16.gmra.mrb[0].mxu0 %v819
  %v1806 = vpop.f32.mrb[0].mxu0
  %v1807 = vadd.f32 %v200, %v1806
  %v1808 = vpop.f32.mrb[0].mxu0
  %v1809 = vpop.f32.mrb[0].mxu0
  %v1810 = vadd.f32 %v200, %v1809
  %v1811 = vpop.f32.mrb[0].mxu0
  %1812 = vmatprep.mubr.bf16.mxu0 %v1191
  %1813 = vmatmul.mubr.bf16.gmra.mrb[0].mxu0 %v821
  %v1814 = vpop.f32.mrb[0].mxu0
  %v1815 = vadd.f32 %v200, %v1814
  %v1816 = vpop.f32.mrb[0].mxu0
  %v1817 = vpop.f32.mrb[0].mxu0
  %v1818 = vadd.f32 %v200, %v1817
  %v1819 = vpop.f32.mrb[0].mxu0
  %1820 = vmatprep.mubr.bf16.mxu0 %v1194
  %1821 = vmatmul.mubr.bf16.gmra.mrb[0].mxu0 %v823
  %v1822 = vpop.f32.mrb[0].mxu0
  %v1823 = vadd.f32 %v200, %v1822
  %v1824 = vpop.f32.mrb[0].mxu0
  %v1825 = vpop.f32.mrb[0].mxu0
  %v1826 = vadd.f32 %v200, %v1825
  %v1827 = vpop.f32.mrb[0].mxu0
  %1828 = vmatprep.mubr.bf16.mxu0 %v1197
  %1829 = vmatmul.mubr.bf16.gmra.mrb[0].mxu0 %v825
  %v1830 = vpop.f32.mrb[0].mxu0
  %v1831 = vadd.f32 %v200, %v1830
  %v1832 = vpop.f32.mrb[0].mxu0
  %v1833 = vpop.f32.mrb[0].mxu0
  %v1834 = vadd.f32 %v200, %v1833
  %v1835 = vpop.f32.mrb[0].mxu0
  %1836 = vmatprep.mubr.bf16.mxu0 %v1200
  %1837 = vmatmul.mubr.bf16.gmra.mrb[0].mxu0 %v827
  %v1838 = vpop.f32.mrb[0].mxu0
  %v1839 = vadd.f32 %v200, %v1838
  %v1840 = vpop.f32.mrb[0].mxu0
  %v1841 = vpop.f32.mrb[0].mxu0
  %v1842 = vadd.f32 %v200, %v1841
  %v1843 = vpop.f32.mrb[0].mxu0
  %1844 = vmatprep.mubr.bf16.mxu0 %v1203
  %1845 = vmatmul.mubr.bf16.gmra.mrb[0].mxu0 %v829
  %v1846 = vpop.f32.mrb[0].mxu0
  %v1847 = vadd.f32 %v200, %v1846
  %v1848 = vpop.f32.mrb[0].mxu0
  %v1849 = vpop.f32.mrb[0].mxu0
  %v1850 = vadd.f32 %v200, %v1849
  %v1851 = vpop.f32.mrb[0].mxu0
  %1852 = vmatprep.mubr.bf16.mxu0 %v1206
  %1853 = vmatmul.mubr.bf16.gmra.mrb[0].mxu0 %v831
  %v1854 = vpop.f32.mrb[0].mxu0
  %v1855 = vadd.f32 %v200, %v1854
  %v1856 = vpop.f32.mrb[0].mxu0
  %v1857 = vpop.f32.mrb[0].mxu0
  %v1858 = vadd.f32 %v200, %v1857
  %v1859 = vpop.f32.mrb[0].mxu0
  %1860 = vmatprep.mubr.bf16.mxu0 %v1209
  %1861 = vmatmul.mubr.bf16.gmra.mrb[0].mxu0 %v833
  %v1862 = vpop.f32.mrb[0].mxu0
  %v1863 = vadd.f32 %v200, %v1862
  %v1864 = vpop.f32.mrb[0].mxu0
  %v1865 = vpop.f32.mrb[0].mxu0
  %v1866 = vadd.f32 %v200, %v1865
  %v1867 = vpop.f32.mrb[0].mxu0
  %1868 = vmatprep.mubr.bf16.mxu0 %v1212
  %1869 = vmatmul.mubr.bf16.gmra.mrb[0].mxu0 %v835
  %v1870 = vpop.f32.mrb[0].mxu0
  %v1871 = vadd.f32 %v200, %v1870
  %v1872 = vpop.f32.mrb[0].mxu0
  %v1873 = vpop.f32.mrb[0].mxu0
  %v1874 = vadd.f32 %v200, %v1873
  %v1875 = vpop.f32.mrb[0].mxu0
  %1876 = vmatprep.mubr.bf16.mxu0 %v1215
  %1877 = vmatmul.mubr.bf16.gmra.mrb[0].mxu0 %v837
  %v1878 = vpop.f32.mrb[0].mxu0
  %v1879 = vadd.f32 %v200, %v1878
  %v1880 = vpop.f32.mrb[0].mxu0
  %v1881 = vpop.f32.mrb[0].mxu0
  %v1882 = vadd.f32 %v200, %v1881
  %v1883 = vpop.f32.mrb[0].mxu0
  %1884 = vmatprep.mubr.bf16.mxu0 %v1218
  %1885 = vmatmul.mubr.bf16.gmra.mrb[0].mxu0 %v839
  %v1886 = vpop.f32.mrb[0].mxu0
  %v1887 = vadd.f32 %v200, %v1886
  %v1888 = vpop.f32.mrb[0].mxu0
  %v1889 = vpop.f32.mrb[0].mxu0
  %v1890 = vadd.f32 %v200, %v1889
  %v1891 = vpop.f32.mrb[0].mxu0
  %1892 = vmatprep.mubr.bf16.mxu0 %v1221
  %1893 = vmatmul.mubr.bf16.gmra.mrb[0].mxu0 %v841
  %v1894 = vpop.f32.mrb[0].mxu0
  %v1895 = vadd.f32 %v200, %v1894
  %v1896 = vpop.f32.mrb[0].mxu0
  %v1897 = vpop.f32.mrb[0].mxu0
  %v1898 = vadd.f32 %v200, %v1897
  %v1899 = vpop.f32.mrb[0].mxu0
  %1900 = vmatprep.mubr.bf16.mxu0 %v1224
  %1901 = vmatmul.mubr.bf16.gmra.mrb[0].mxu0 %v843
  %v1902 = vpop.f32.mrb[0].mxu0
  %v1903 = vadd.f32 %v200, %v1902
  %v1904 = vpop.f32.mrb[0].mxu0
  %v1905 = vpop.f32.mrb[0].mxu0
  %v1906 = vadd.f32 %v200, %v1905
  %v1907 = vpop.f32.mrb[0].mxu0
  %1908 = vmatprep.mubr.bf16.mxu0 %v1227
  %1909 = vmatmul.mubr.bf16.gmra.mrb[0].mxu0 %v845
  %v1910 = vpop.f32.mrb[0].mxu0
  %v1911 = vadd.f32 %v200, %v1910
  %v1912 = vpop.f32.mrb[0].mxu0
  %v1913 = vpop.f32.mrb[0].mxu0
  %v1914 = vpop.f32.mrb[0].mxu0
  %1915 = vdwg.mxu0
  %v1916 = vmax.f32 %v1271, 0.0
  %v1917 = vmax.f32 %v1274, 0.0
  %v1918 = vmax.f32 %v1279, 0.0
  %v1919 = vmax.f32 %v1282, 0.0
  %v1920 = vmax.f32 %v1287, 0.0
  %v1921 = vmax.f32 %v1290, 0.0
  %v1922 = vmax.f32 %v1295, 0.0
  %v1923 = vmax.f32 %v1298, 0.0
  %v1924 = vmax.f32 %v1303, 0.0
  %v1925 = vmax.f32 %v1306, 0.0
  %v1926 = vmax.f32 %v1311, 0.0
  %v1927 = vmax.f32 %v1314, 0.0
  %v1928 = vmax.f32 %v1319, 0.0
  %v1929 = vmax.f32 %v1322, 0.0
  %v1930 = vmax.f32 %v1327, 0.0
  %v1931 = vmax.f32 %v1330, 0.0
  %v1932 = vmax.f32 %v1335, 0.0
  %v1933 = vmax.f32 %v1338, 0.0
  %v1934 = vmax.f32 %v1343, 0.0
  %v1935 = vmax.f32 %v1346, 0.0
  %v1936 = vmax.f32 %v1351, 0.0
  %v1937 = vmax.f32 %v1354, 0.0
  %v1938 = vmax.f32 %v1359, 0.0
  %v1939 = vmax.f32 %v1362, 0.0
  %v1940 = vmax.f32 %v1367, 0.0
  %v1941 = vmax.f32 %v1370, 0.0
  %v1942 = vmax.f32 %v1375, 0.0
  %v1943 = vmax.f32 %v1378, 0.0
  %v1944 = vmax.f32 %v1383, 0.0
  %v1945 = vmax.f32 %v1386, 0.0
  %v1946 = vmax.f32 %v1391, 0.0
  %v1947 = vmax.f32 %v1394, 0.0
  %v1948 = vmax.f32 %v1399, 0.0
  %v1949 = vmax.f32 %v1402, 0.0
  %v1950 = vmax.f32 %v1407, 0.0
  %v1951 = vmax.f32 %v1410, 0.0
  %v1952 = vmax.f32 %v1415, 0.0
  %v1953 = vmax.f32 %v1418, 0.0
  %v1954 = vmax.f32 %v1423, 0.0
  %v1955 = vmax.f32 %v1426, 0.0
  %v1956 = vmax.f32 %v1431, 0.0
  %v1957 = vmax.f32 %v1434, 0.0
  %v1958 = vmax.f32 %v1439, 0.0
  %v1959 = vmax.f32 %v1442, 0.0
  %v1960 = vmax.f32 %v1447, 0.0
  %v1961 = vmax.f32 %v1450, 0.0
  %v1962 = vmax.f32 %v1455, 0.0
  %v1963 = vmax.f32 %v1458, 0.0
  %v1964 = vmax.f32 %v1463, 0.0
  %v1965 = vmax.f32 %v1466, 0.0
  %v1966 = vmax.f32 %v1471, 0.0
  %v1967 = vmax.f32 %v1474, 0.0
  %v1968 = vmax.f32 %v1479, 0.0
  %v1969 = vmax.f32 %v1482, 0.0
  %v1970 = vmax.f32 %v1487, 0.0
  %v1971 = vmax.f32 %v1490, 0.0
  %v1972 = vmax.f32 %v1495, 0.0
  %v1973 = vmax.f32 %v1498, 0.0
  %v1974 = vmax.f32 %v1503, 0.0
  %v1975 = vmax.f32 %v1506, 0.0
  %v1976 = vmax.f32 %v1511, 0.0
  %v1977 = vmax.f32 %v1514, 0.0
  %v1978 = vmax.f32 %v1519, 0.0
  %v1979 = vmax.f32 %v1522, 0.0
  %v1980 = vmax.f32 %v1527, 0.0
  %v1981 = vmax.f32 %v1530, 0.0
  %v1982 = vmax.f32 %v1535, 0.0
  %v1983 = vmax.f32 %v1538, 0.0
  %v1984 = vmax.f32 %v1543, 0.0
  %v1985 = vmax.f32 %v1546, 0.0
  %v1986 = vmax.f32 %v1551, 0.0
  %v1987 = vmax.f32 %v1554, 0.0
  %v1988 = vmax.f32 %v1559, 0.0
  %v1989 = vmax.f32 %v1562, 0.0
  %v1990 = vmax.f32 %v1567, 0.0
  %v1991 = vmax.f32 %v1570, 0.0
  %v1992 = vmax.f32 %v1575, 0.0
  %v1993 = vmax.f32 %v1578, 0.0
  %v1994 = vmax.f32 %v1583, 0.0
  %v1995 = vmax.f32 %v1586, 0.0
  %v1996 = vmax.f32 %v1591, 0.0
  %v1997 = vmax.f32 %v1594, 0.0
  %v1998 = vmax.f32 %v1599, 0.0
  %v1999 = vmax.f32 %v1602, 0.0
  %v2000 = vmax.f32 %v1607, 0.0
  %v2001 = vmax.f32 %v1610, 0.0
  %v2002 = vmax.f32 %v1615, 0.0
  %v2003 = vmax.f32 %v1618, 0.0
  %v2004 = vmax.f32 %v1623, 0.0
  %v2005 = vmax.f32 %v1626, 0.0
  %v2006 = vmax.f32 %v1631, 0.0
  %v2007 = vmax.f32 %v1634, 0.0
  %v2008 = vmax.f32 %v1639, 0.0
  %v2009 = vmax.f32 %v1642, 0.0
  %v2010 = vmax.f32 %v1647, 0.0
  %v2011 = vmax.f32 %v1650, 0.0
  %v2012 = vmax.f32 %v1655, 0.0
  %v2013 = vmax.f32 %v1658, 0.0
  %v2014 = vmax.f32 %v1663, 0.0
  %v2015 = vmax.f32 %v1666, 0.0
  %v2016 = vmax.f32 %v1671, 0.0
  %v2017 = vmax.f32 %v1674, 0.0
  %v2018 = vmax.f32 %v1679, 0.0
  %v2019 = vmax.f32 %v1682, 0.0
  %v2020 = vmax.f32 %v1687, 0.0
  %v2021 = vmax.f32 %v1690, 0.0
  %v2022 = vmax.f32 %v1695, 0.0
  %v2023 = vmax.f32 %v1698, 0.0
  %v2024 = vmax.f32 %v1703, 0.0
  %v2025 = vmax.f32 %v1706, 0.0
  %v2026 = vmax.f32 %v1711, 0.0
  %v2027 = vmax.f32 %v1714, 0.0
  %v2028 = vmax.f32 %v1719, 0.0
  %v2029 = vmax.f32 %v1722, 0.0
  %v2030 = vmax.f32 %v1727, 0.0
  %v2031 = vmax.f32 %v1730, 0.0
  %v2032 = vmax.f32 %v1735, 0.0
  %v2033 = vmax.f32 %v1738, 0.0
  %v2034 = vmax.f32 %v1743, 0.0
  %v2035 = vmax.f32 %v1746, 0.0
  %v2036 = vmax.f32 %v1751, 0.0
  %v2037 = vmax.f32 %v1754, 0.0
  %v2038 = vmax.f32 %v1759, 0.0
  %v2039 = vmax.f32 %v1762, 0.0
  %v2040 = vmax.f32 %v1767, 0.0
  %v2041 = vmax.f32 %v1770, 0.0
  %v2042 = vmax.f32 %v1775, 0.0
  %v2043 = vmax.f32 %v1778, 0.0
  %v2044 = vmax.f32 %v1783, 0.0
  %v2045 = vmax.f32 %v1786, 0.0
  %v2046 = vmax.f32 %v1791, 0.0
  %v2047 = vmax.f32 %v1794, 0.0
  %v2048 = vmax.f32 %v1799, 0.0
  %v2049 = vmax.f32 %v1802, 0.0
  %v2050 = vmax.f32 %v1807, 0.0
  %v2051 = vmax.f32 %v1810, 0.0
  %v2052 = vmax.f32 %v1815, 0.0
  %v2053 = vmax.f32 %v1818, 0.0
  %v2054 = vmax.f32 %v1823, 0.0
  %v2055 = vmax.f32 %v1826, 0.0
  %v2056 = vmax.f32 %v1831, 0.0
  %v2057 = vmax.f32 %v1834, 0.0
  %v2058 = vmax.f32 %v1839, 0.0
  %v2059 = vmax.f32 %v1842, 0.0
  %v2060 = vmax.f32 %v1847, 0.0
  %v2061 = vmax.f32 %v1850, 0.0
  %v2062 = vmax.f32 %v1855, 0.0
  %v2063 = vmax.f32 %v1858, 0.0
  %v2064 = vmax.f32 %v1863, 0.0
  %v2065 = vmax.f32 %v1866, 0.0
  %v2066 = vmax.f32 %v1871, 0.0
  %v2067 = vmax.f32 %v1874, 0.0
  %v2068 = vmax.f32 %v1879, 0.0
  %v2069 = vmax.f32 %v1882, 0.0
  %v2070 = vmax.f32 %v1887, 0.0
  %v2071 = vmax.f32 %v1890, 0.0
  %v2072 = vmax.f32 %v1895, 0.0
  %v2073 = vmax.f32 %v1898, 0.0
  %v2074 = vmax.f32 %v1903, 0.0
  %v2075 = vmax.f32 %v1906, 0.0
  %v2076 = vmax.f32 %v1911, 0.0
  %v2077 = vpack.c.bf16 %v1917, %v1916
  %v2078 = vpack.c.bf16 %v1919, %v1918
  %v2079 = vpack.c.bf16 %v1921, %v1920
  %v2080 = vpack.c.bf16 %v1923, %v1922
  %v2081 = vpack.c.bf16 %v1925, %v1924
  %v2082 = vpack.c.bf16 %v1927, %v1926
  %v2083 = vpack.c.bf16 %v1929, %v1928
  %v2084 = vpack.c.bf16 %v1931, %v1930
  %v2085 = vpack.c.bf16 %v1933, %v1932
  %v2086 = vpack.c.bf16 %v1935, %v1934
  %v2087 = vpack.c.bf16 %v1937, %v1936
  %v2088 = vpack.c.bf16 %v1939, %v1938
  %v2089 = vpack.c.bf16 %v1941, %v1940
  %v2090 = vpack.c.bf16 %v1943, %v1942
  %v2091 = vpack.c.bf16 %v1945, %v1944
  %v2092 = vpack.c.bf16 %v1947, %v1946
  %v2093 = vpack.c.bf16 %v1949, %v1948
  %v2094 = vpack.c.bf16 %v1951, %v1950
  %v2095 = vpack.c.bf16 %v1953, %v1952
  %v2096 = vpack.c.bf16 %v1955, %v1954
  %v2097 = vpack.c.bf16 %v1957, %v1956
  %v2098 = vpack.c.bf16 %v1959, %v1958
  %v2099 = vpack.c.bf16 %v1961, %v1960
  %v2100 = vpack.c.bf16 %v1963, %v1962
  %v2101 = vpack.c.bf16 %v1965, %v1964
  %v2102 = vpack.c.bf16 %v1967, %v1966
  %v2103 = vpack.c.bf16 %v1969, %v1968
  %v2104 = vpack.c.bf16 %v1971, %v1970
  %v2105 = vpack.c.bf16 %v1973, %v1972
  %v2106 = vpack.c.bf16 %v1975, %v1974
  %v2107 = vpack.c.bf16 %v1977, %v1976
  %v2108 = vpack.c.bf16 %v1979, %v1978
  %v2109 = vpack.c.bf16 %v1981, %v1980
  %v2110 = vpack.c.bf16 %v1983, %v1982
  %v2111 = vpack.c.bf16 %v1985, %v1984
  %v2112 = vpack.c.bf16 %v1987, %v1986
  %v2113 = vpack.c.bf16 %v1989, %v1988
  %v2114 = vpack.c.bf16 %v1991, %v1990
  %v2115 = vpack.c.bf16 %v1993, %v1992
  %v2116 = vpack.c.bf16 %v1995, %v1994
  %v2117 = vpack.c.bf16 %v1997, %v1996
  %v2118 = vpack.c.bf16 %v1999, %v1998
  %v2119 = vpack.c.bf16 %v2001, %v2000
  %v2120 = vpack.c.bf16 %v2003, %v2002
  %v2121 = vpack.c.bf16 %v2005, %v2004
  %v2122 = vpack.c.bf16 %v2007, %v2006
  %v2123 = vpack.c.bf16 %v2009, %v2008
  %v2124 = vpack.c.bf16 %v2011, %v2010
  %v2125 = vpack.c.bf16 %v2013, %v2012
  %v2126 = vpack.c.bf16 %v2015, %v2014
  %v2127 = vpack.c.bf16 %v2017, %v2016
  %v2128 = vpack.c.bf16 %v2019, %v2018
  %v2129 = vpack.c.bf16 %v2021, %v2020
  %v2130 = vpack.c.bf16 %v2023, %v2022
  %v2131 = vpack.c.bf16 %v2025, %v2024
  %v2132 = vpack.c.bf16 %v2027, %v2026
  %v2133 = vpack.c.bf16 %v2029, %v2028
  %v2134 = vpack.c.bf16 %v2031, %v2030
  %v2135 = vpack.c.bf16 %v2033, %v2032
  %v2136 = vpack.c.bf16 %v2035, %v2034
  %v2137 = vpack.c.bf16 %v2037, %v2036
  %v2138 = vpack.c.bf16 %v2039, %v2038
  %v2139 = vpack.c.bf16 %v2041, %v2040
  %v2140 = vpack.c.bf16 %v2043, %v2042
  %v2141 = vpack.c.bf16 %v2045, %v2044
  %v2142 = vpack.c.bf16 %v2047, %v2046
  %v2143 = vpack.c.bf16 %v2049, %v2048
  %v2144 = vpack.c.bf16 %v2051, %v2050
  %v2145 = vpack.c.bf16 %v2053, %v2052
  %v2146 = vpack.c.bf16 %v2055, %v2054
  %v2147 = vpack.c.bf16 %v2057, %v2056
  %v2148 = vpack.c.bf16 %v2059, %v2058
  %v2149 = vpack.c.bf16 %v2061, %v2060
  %v2150 = vpack.c.bf16 %v2063, %v2062
  %v2151 = vpack.c.bf16 %v2065, %v2064
  %v2152 = vpack.c.bf16 %v2067, %v2066
  %v2153 = vpack.c.bf16 %v2069, %v2068
  %v2154 = vpack.c.bf16 %v2071, %v2070
  %v2155 = vpack.c.bf16 %v2073, %v2072
  %v2156 = vpack.c.bf16 %v2075, %v2074
  %v2157 = vpack.c.bf16 %v2076, %v2076
  %v2239 = vunpack.c.l.b16 %v2077
  %v2240 = vunpack.c.h.b16 %v2077
  %v2241 = vunpack.c.l.b16 %v2078
  %v2242 = vunpack.c.h.b16 %v2078
  %v2243 = vunpack.c.l.b16 %v2079
  %v2244 = vunpack.c.h.b16 %v2079
  %v2245 = vunpack.c.l.b16 %v2080
  %v2246 = vunpack.c.h.b16 %v2080
  %v2247 = vunpack.c.l.b16 %v2081
  %v2248 = vunpack.c.h.b16 %v2081
  %v2249 = vunpack.c.l.b16 %v2082
  %v2250 = vunpack.c.h.b16 %v2082
  %v2251 = vunpack.c.l.b16 %v2083
  %v2252 = vunpack.c.h.b16 %v2083
  %v2253 = vunpack.c.l.b16 %v2084
  %v2254 = vunpack.c.h.b16 %v2084
  %v2255 = vunpack.c.l.b16 %v2085
  %v2256 = vunpack.c.h.b16 %v2085
  %v2257 = vunpack.c.l.b16 %v2086
  %v2258 = vunpack.c.h.b16 %v2086
  %v2259 = vunpack.c.l.b16 %v2087
  %v2260 = vunpack.c.h.b16 %v2087
  %v2261 = vunpack.c.l.b16 %v2088
  %v2262 = vunpack.c.h.b16 %v2088
  %v2263 = vunpack.c.l.b16 %v2089
  %v2264 = vunpack.c.h.b16 %v2089
  %v2265 = vunpack.c.l.b16 %v2090
  %v2266 = vunpack.c.h.b16 %v2090
  %v2267 = vunpack.c.l.b16 %v2091
  %v2268 = vunpack.c.h.b16 %v2091
  %v2269 = vunpack.c.l.b16 %v2092
  %v2270 = vunpack.c.h.b16 %v2092
  %v2271 = vunpack.c.l.b16 %v2093
  %v2272 = vunpack.c.h.b16 %v2093
  %v2273 = vunpack.c.l.b16 %v2094
  %v2274 = vunpack.c.h.b16 %v2094
  %v2275 = vunpack.c.l.b16 %v2095
  %v2276 = vunpack.c.h.b16 %v2095
  %v2277 = vunpack.c.l.b16 %v2096
  %v2278 = vunpack.c.h.b16 %v2096
  %v2279 = vunpack.c.l.b16 %v2097
  %v2280 = vunpack.c.h.b16 %v2097
  %v2281 = vunpack.c.l.b16 %v2098
  %v2282 = vunpack.c.h.b16 %v2098
  %v2283 = vunpack.c.l.b16 %v2099
  %v2284 = vunpack.c.h.b16 %v2099
  %v2285 = vunpack.c.l.b16 %v2100
  %v2286 = vunpack.c.h.b16 %v2100
  %v2287 = vunpack.c.l.b16 %v2101
  %v2288 = vunpack.c.h.b16 %v2101
  %v2289 = vunpack.c.l.b16 %v2102
  %v2290 = vunpack.c.h.b16 %v2102
  %v2291 = vunpack.c.l.b16 %v2103
  %v2292 = vunpack.c.h.b16 %v2103
  %v2293 = vunpack.c.l.b16 %v2104
  %v2294 = vunpack.c.h.b16 %v2104
  %v2295 = vunpack.c.l.b16 %v2105
  %v2296 = vunpack.c.h.b16 %v2105
  %v2297 = vunpack.c.l.b16 %v2106
  %v2298 = vunpack.c.h.b16 %v2106
  %v2299 = vunpack.c.l.b16 %v2107
  %v2300 = vunpack.c.h.b16 %v2107
  %v2301 = vunpack.c.l.b16 %v2108
  %v2302 = vunpack.c.h.b16 %v2108
  %v2303 = vunpack.c.l.b16 %v2109
  %v2304 = vunpack.c.h.b16 %v2109
  %v2305 = vunpack.c.l.b16 %v2110
  %v2306 = vunpack.c.h.b16 %v2110
  %v2307 = vunpack.c.l.b16 %v2111
  %v2308 = vunpack.c.h.b16 %v2111
  %v2309 = vunpack.c.l.b16 %v2112
  %v2310 = vunpack.c.h.b16 %v2112
  %v2311 = vunpack.c.l.b16 %v2113
  %v2312 = vunpack.c.h.b16 %v2113
  %v2313 = vunpack.c.l.b16 %v2114
  %v2314 = vunpack.c.h.b16 %v2114
  %v2315 = vunpack.c.l.b16 %v2115
  %v2316 = vunpack.c.h.b16 %v2115
  %v2317 = vunpack.c.l.b16 %v2116
  %v2318 = vunpack.c.h.b16 %v2116
  %v2319 = vunpack.c.l.b16 %v2117
  %v2320 = vunpack.c.h.b16 %v2117
  %v2321 = vunpack.c.l.b16 %v2118
  %v2322 = vunpack.c.h.b16 %v2118
  %v2323 = vunpack.c.l.b16 %v2119
  %v2324 = vunpack.c.h.b16 %v2119
  %v2325 = vunpack.c.l.b16 %v2120
  %v2326 = vunpack.c.h.b16 %v2120
  %v2327 = vunpack.c.l.b16 %v2121
  %v2328 = vunpack.c.h.b16 %v2121
  %v2329 = vunpack.c.l.b16 %v2122
  %v2330 = vunpack.c.h.b16 %v2122
  %v2331 = vunpack.c.l.b16 %v2123
  %v2332 = vunpack.c.h.b16 %v2123
  %v2333 = vunpack.c.l.b16 %v2124
  %v2334 = vunpack.c.h.b16 %v2124
  %v2335 = vunpack.c.l.b16 %v2125
  %v2336 = vunpack.c.h.b16 %v2125
  %v2337 = vunpack.c.l.b16 %v2126
  %v2338 = vunpack.c.h.b16 %v2126
  %v2339 = vunpack.c.l.b16 %v2127
  %v2340 = vunpack.c.h.b16 %v2127
  %v2341 = vunpack.c.l.b16 %v2128
  %v2342 = vunpack.c.h.b16 %v2128
  %v2343 = vunpack.c.l.b16 %v2129
  %v2344 = vunpack.c.h.b16 %v2129
  %v2345 = vunpack.c.l.b16 %v2130
  %v2346 = vunpack.c.h.b16 %v2130
  %v2347 = vunpack.c.l.b16 %v2131
  %v2348 = vunpack.c.h.b16 %v2131
  %v2349 = vunpack.c.l.b16 %v2132
  %v2350 = vunpack.c.h.b16 %v2132
  %v2351 = vunpack.c.l.b16 %v2133
  %v2352 = vunpack.c.h.b16 %v2133
  %v2353 = vunpack.c.l.b16 %v2134
  %v2354 = vunpack.c.h.b16 %v2134
  %v2355 = vunpack.c.l.b16 %v2135
  %v2356 = vunpack.c.h.b16 %v2135
  %v2357 = vunpack.c.l.b16 %v2136
  %v2358 = vunpack.c.h.b16 %v2136
  %v2359 = vunpack.c.l.b16 %v2137
  %v2360 = vunpack.c.h.b16 %v2137
  %v2361 = vunpack.c.l.b16 %v2138
  %v2362 = vunpack.c.h.b16 %v2138
  %v2363 = vunpack.c.l.b16 %v2139
  %v2364 = vunpack.c.h.b16 %v2139
  %v2365 = vunpack.c.l.b16 %v2140
  %v2366 = vunpack.c.h.b16 %v2140
  %v2367 = vunpack.c.l.b16 %v2141
  %v2368 = vunpack.c.h.b16 %v2141
  %v2369 = vunpack.c.l.b16 %v2142
  %v2370 = vunpack.c.h.b16 %v2142
  %v2371 = vunpack.c.l.b16 %v2143
  %v2372 = vunpack.c.h.b16 %v2143
  %v2373 = vunpack.c.l.b16 %v2144
  %v2374 = vunpack.c.h.b16 %v2144
  %v2375 = vunpack.c.l.b16 %v2145
  %v2376 = vunpack.c.h.b16 %v2145
  %v2377 = vunpack.c.l.b16 %v2146
  %v2378 = vunpack.c.h.b16 %v2146
  %v2379 = vunpack.c.l.b16 %v2147
  %v2380 = vunpack.c.h.b16 %v2147
  %v2381 = vunpack.c.l.b16 %v2148
  %v2382 = vunpack.c.h.b16 %v2148
  %v2383 = vunpack.c.l.b16 %v2149
  %v2384 = vunpack.c.h.b16 %v2149
  %v2385 = vunpack.c.l.b16 %v2150
  %v2386 = vunpack.c.h.b16 %v2150
  %v2387 = vunpack.c.l.b16 %v2151
  %v2388 = vunpack.c.h.b16 %v2151
  %v2389 = vunpack.c.l.b16 %v2152
  %v2390 = vunpack.c.h.b16 %v2152
  %v2391 = vunpack.c.l.b16 %v2153
  %v2392 = vunpack.c.h.b16 %v2153
  %v2393 = vunpack.c.l.b16 %v2154
  %v2394 = vunpack.c.h.b16 %v2154
  %v2395 = vunpack.c.l.b16 %v2155
  %v2396 = vunpack.c.h.b16 %v2155
  %v2397 = vunpack.c.l.b16 %v2156
  %v2398 = vunpack.c.h.b16 %v2156
  %v2399 = vunpack.c.l.b16 %v2157
  %v2400 = vpack.c.b16 %v2239, %v2239
  %v2401 = vpack.c.b16 %v2240, %v2240
  %v2402 = vpack.c.b16 %v2241, %v2241
  %v2403 = vpack.c.b16 %v2242, %v2242
  %v2404 = vpack.c.b16 %v2243, %v2243
  %v2405 = vpack.c.b16 %v2244, %v2244
  %v2406 = vpack.c.b16 %v2245, %v2245
  %v2407 = vpack.c.b16 %v2246, %v2246
  %v2408 = vpack.c.b16 %v2247, %v2247
  %v2409 = vpack.c.b16 %v2248, %v2248
  %v2410 = vpack.c.b16 %v2249, %v2249
  %v2411 = vpack.c.b16 %v2250, %v2250
  %v2412 = vpack.c.b16 %v2251, %v2251
  %v2413 = vpack.c.b16 %v2252, %v2252
  %v2414 = vpack.c.b16 %v2253, %v2253
  %v2415 = vpack.c.b16 %v2254, %v2254
  %v2416 = vpack.c.b16 %v2255, %v2255
  %v2417 = vpack.c.b16 %v2256, %v2256
  %v2418 = vpack.c.b16 %v2257, %v2257
  %v2419 = vpack.c.b16 %v2258, %v2258
  %v2420 = vpack.c.b16 %v2259, %v2259
  %v2421 = vpack.c.b16 %v2260, %v2260
  %v2422 = vpack.c.b16 %v2261, %v2261
  %v2423 = vpack.c.b16 %v2262, %v2262
  %v2424 = vpack.c.b16 %v2263, %v2263
  %v2425 = vpack.c.b16 %v2264, %v2264
  %v2426 = vpack.c.b16 %v2265, %v2265
  %v2427 = vpack.c.b16 %v2266, %v2266
  %v2428 = vpack.c.b16 %v2267, %v2267
  %v2429 = vpack.c.b16 %v2268, %v2268
  %v2430 = vpack.c.b16 %v2269, %v2269
  %v2431 = vpack.c.b16 %v2270, %v2270
  %v2432 = vpack.c.b16 %v2271, %v2271
  %v2433 = vpack.c.b16 %v2272, %v2272
  %v2434 = vpack.c.b16 %v2273, %v2273
  %v2435 = vpack.c.b16 %v2274, %v2274
  %v2436 = vpack.c.b16 %v2275, %v2275
  %v2437 = vpack.c.b16 %v2276, %v2276
  %v2438 = vpack.c.b16 %v2277, %v2277
  %v2439 = vpack.c.b16 %v2278, %v2278
  %v2440 = vpack.c.b16 %v2279, %v2279
  %v2441 = vpack.c.b16 %v2280, %v2280
  %v2442 = vpack.c.b16 %v2281, %v2281
  %v2443 = vpack.c.b16 %v2282, %v2282
  %v2444 = vpack.c.b16 %v2283, %v2283
  %v2445 = vpack.c.b16 %v2284, %v2284
  %v2446 = vpack.c.b16 %v2285, %v2285
  %v2447 = vpack.c.b16 %v2286, %v2286
  %v2448 = vpack.c.b16 %v2287, %v2287
  %v2449 = vpack.c.b16 %v2288, %v2288
  %v2450 = vpack.c.b16 %v2289, %v2289
  %v2451 = vpack.c.b16 %v2290, %v2290
  %v2452 = vpack.c.b16 %v2291, %v2291
  %v2453 = vpack.c.b16 %v2292, %v2292
  %v2454 = vpack.c.b16 %v2293, %v2293
  %v2455 = vpack.c.b16 %v2294, %v2294
  %v2456 = vpack.c.b16 %v2295, %v2295
  %v2457 = vpack.c.b16 %v2296, %v2296
  %v2458 = vpack.c.b16 %v2297, %v2297
  %v2459 = vpack.c.b16 %v2298, %v2298
  %v2460 = vpack.c.b16 %v2299, %v2299
  %v2461 = vpack.c.b16 %v2300, %v2300
  %v2462 = vpack.c.b16 %v2301, %v2301
  %v2463 = vpack.c.b16 %v2302, %v2302
  %v2464 = vpack.c.b16 %v2303, %v2303
  %v2465 = vpack.c.b16 %v2304, %v2304
  %v2466 = vpack.c.b16 %v2305, %v2305
  %v2467 = vpack.c.b16 %v2306, %v2306
  %v2468 = vpack.c.b16 %v2307, %v2307
  %v2469 = vpack.c.b16 %v2308, %v2308
  %v2470 = vpack.c.b16 %v2309, %v2309
  %v2471 = vpack.c.b16 %v2310, %v2310
  %v2472 = vpack.c.b16 %v2311, %v2311
  %v2473 = vpack.c.b16 %v2312, %v2312
  %v2474 = vpack.c.b16 %v2313, %v2313
  %v2475 = vpack.c.b16 %v2314, %v2314
  %v2476 = vpack.c.b16 %v2315, %v2315
  %v2477 = vpack.c.b16 %v2316, %v2316
  %v2478 = vpack.c.b16 %v2317, %v2317
  %v2479 = vpack.c.b16 %v2318, %v2318
  %v2480 = vpack.c.b16 %v2319, %v2319
  %v2481 = vpack.c.b16 %v2320, %v2320
  %v2482 = vpack.c.b16 %v2321, %v2321
  %v2483 = vpack.c.b16 %v2322, %v2322
  %v2484 = vpack.c.b16 %v2323, %v2323
  %v2485 = vpack.c.b16 %v2324, %v2324
  %v2486 = vpack.c.b16 %v2325, %v2325
  %v2487 = vpack.c.b16 %v2326, %v2326
  %v2488 = vpack.c.b16 %v2327, %v2327
  %v2489 = vpack.c.b16 %v2328, %v2328
  %v2490 = vpack.c.b16 %v2329, %v2329
  %v2491 = vpack.c.b16 %v2330, %v2330
  %v2492 = vpack.c.b16 %v2331, %v2331
  %v2493 = vpack.c.b16 %v2332, %v2332
  %v2494 = vpack.c.b16 %v2333, %v2333
  %v2495 = vpack.c.b16 %v2334, %v2334
  %v2496 = vpack.c.b16 %v2335, %v2335
  %v2497 = vpack.c.b16 %v2336, %v2336
  %v2498 = vpack.c.b16 %v2337, %v2337
  %v2499 = vpack.c.b16 %v2338, %v2338
  %v2500 = vpack.c.b16 %v2339, %v2339
  %v2501 = vpack.c.b16 %v2340, %v2340
  %v2502 = vpack.c.b16 %v2341, %v2341
  %v2503 = vpack.c.b16 %v2342, %v2342
  %v2504 = vpack.c.b16 %v2343, %v2343
  %v2505 = vpack.c.b16 %v2344, %v2344
  %v2506 = vpack.c.b16 %v2345, %v2345
  %v2507 = vpack.c.b16 %v2346, %v2346
  %v2508 = vpack.c.b16 %v2347, %v2347
  %v2509 = vpack.c.b16 %v2348, %v2348
  %v2510 = vpack.c.b16 %v2349, %v2349
  %v2511 = vpack.c.b16 %v2350, %v2350
  %v2512 = vpack.c.b16 %v2351, %v2351
  %v2513 = vpack.c.b16 %v2352, %v2352
  %v2514 = vpack.c.b16 %v2353, %v2353
  %v2515 = vpack.c.b16 %v2354, %v2354
  %v2516 = vpack.c.b16 %v2355, %v2355
  %v2517 = vpack.c.b16 %v2356, %v2356
  %v2518 = vpack.c.b16 %v2357, %v2357
  %v2519 = vpack.c.b16 %v2358, %v2358
  %v2520 = vpack.c.b16 %v2359, %v2359
  %v2521 = vpack.c.b16 %v2360, %v2360
  %v2522 = vpack.c.b16 %v2361, %v2361
  %v2523 = vpack.c.b16 %v2362, %v2362
  %v2524 = vpack.c.b16 %v2363, %v2363
  %v2525 = vpack.c.b16 %v2364, %v2364
  %v2526 = vpack.c.b16 %v2365, %v2365
  %v2527 = vpack.c.b16 %v2366, %v2366
  %v2528 = vpack.c.b16 %v2367, %v2367
  %v2529 = vpack.c.b16 %v2368, %v2368
  %v2530 = vpack.c.b16 %v2369, %v2369
  %v2531 = vpack.c.b16 %v2370, %v2370
  %v2532 = vpack.c.b16 %v2371, %v2371
  %v2533 = vpack.c.b16 %v2372, %v2372
  %v2534 = vpack.c.b16 %v2373, %v2373
  %v2535 = vpack.c.b16 %v2374, %v2374
  %v2536 = vpack.c.b16 %v2375, %v2375
  %v2537 = vpack.c.b16 %v2376, %v2376
  %v2538 = vpack.c.b16 %v2377, %v2377
  %v2539 = vpack.c.b16 %v2378, %v2378
  %v2540 = vpack.c.b16 %v2379, %v2379
  %v2541 = vpack.c.b16 %v2380, %v2380
  %v2542 = vpack.c.b16 %v2381, %v2381
  %v2543 = vpack.c.b16 %v2382, %v2382
  %v2544 = vpack.c.b16 %v2383, %v2383
  %v2545 = vpack.c.b16 %v2384, %v2384
  %v2546 = vpack.c.b16 %v2385, %v2385
  %v2547 = vpack.c.b16 %v2386, %v2386
  %v2548 = vpack.c.b16 %v2387, %v2387
  %v2549 = vpack.c.b16 %v2388, %v2388
  %v2550 = vpack.c.b16 %v2389, %v2389
  %v2551 = vpack.c.b16 %v2390, %v2390
  %v2552 = vpack.c.b16 %v2391, %v2391
  %v2553 = vpack.c.b16 %v2392, %v2392
  %v2554 = vpack.c.b16 %v2393, %v2393
  %v2555 = vpack.c.b16 %v2394, %v2394
  %v2556 = vpack.c.b16 %v2395, %v2395
  %v2557 = vpack.c.b16 %v2396, %v2396
  %v2558 = vpack.c.b16 %v2397, %v2397
  %v2559 = vpack.c.b16 %v2398, %v2398
  %v2560 = vpack.c.b16 %v2399, %v2399
  %vm2722 = vcmask 519168
  %2723 = vst.msk [vmem:[%s3] sm:$0xf] %vm2722, %v2400
  %2724 = vst.msk [vmem:[%s3 + $0x4] sm:$0xf] %vm2722, %v2401
  %2725 = vst.msk [vmem:[%s3 + $0x8] sm:$0xf] %vm2722, %v2402
  %2726 = vst.msk [vmem:[%s3 + $0xc] sm:$0xf] %vm2722, %v2403
  %2727 = vst.msk [vmem:[%s3 + $0x10] sm:$0xf] %vm2722, %v2404
  %2728 = vst.msk [vmem:[%s3 + $0x14] sm:$0xf] %vm2722, %v2405
  %2729 = vst.msk [vmem:[%s3 + $0x18] sm:$0xf] %vm2722, %v2406
  %2730 = vst.msk [vmem:[%s3 + $0x1c] sm:$0xf] %vm2722, %v2407
  %2731 = vst.msk [vmem:[%s3 + $0x20] sm:$0xf] %vm2722, %v2408
  %2732 = vst.msk [vmem:[%s3 + $0x24] sm:$0xf] %vm2722, %v2409
  %2733 = vst.msk [vmem:[%s3 + $0x28] sm:$0xf] %vm2722, %v2410
  %2734 = vst.msk [vmem:[%s3 + $0x2c] sm:$0xf] %vm2722, %v2411
  %2735 = vst.msk [vmem:[%s3 + $0x30] sm:$0xf] %vm2722, %v2412
  %2736 = vst.msk [vmem:[%s3 + $0x34] sm:$0xf] %vm2722, %v2413
  %2737 = vst.msk [vmem:[%s3 + $0x38] sm:$0xf] %vm2722, %v2414
  %2738 = vst.msk [vmem:[%s3 + $0x3c] sm:$0xf] %vm2722, %v2415
  %2739 = vst.msk [vmem:[%s3 + $0x40] sm:$0xf] %vm2722, %v2416
  %2740 = vst.msk [vmem:[%s3 + $0x44] sm:$0xf] %vm2722, %v2417
  %2741 = vst.msk [vmem:[%s3 + $0x48] sm:$0xf] %vm2722, %v2418
  %2742 = vst.msk [vmem:[%s3 + $0x4c] sm:$0xf] %vm2722, %v2419
  %2743 = vst.msk [vmem:[%s3 + $0x50] sm:$0xf] %vm2722, %v2420
  %2744 = vst.msk [vmem:[%s3 + $0x54] sm:$0xf] %vm2722, %v2421
  %2745 = vst.msk [vmem:[%s3 + $0x58] sm:$0xf] %vm2722, %v2422
  %2746 = vst.msk [vmem:[%s3 + $0x5c] sm:$0xf] %vm2722, %v2423
  %2747 = vst.msk [vmem:[%s3 + $0x60] sm:$0xf] %vm2722, %v2424
  %2748 = vst.msk [vmem:[%s3 + $0x64] sm:$0xf] %vm2722, %v2425
  %2749 = vst.msk [vmem:[%s3 + $0x68] sm:$0xf] %vm2722, %v2426
  %2750 = vst.msk [vmem:[%s3 + $0x6c] sm:$0xf] %vm2722, %v2427
  %2751 = vst.msk [vmem:[%s3 + $0x70] sm:$0xf] %vm2722, %v2428
  %2752 = vst.msk [vmem:[%s3 + $0x74] sm:$0xf] %vm2722, %v2429
  %2753 = vst.msk [vmem:[%s3 + $0x78] sm:$0xf] %vm2722, %v2430
  %2754 = vst.msk [vmem:[%s3 + $0x7c] sm:$0xf] %vm2722, %v2431
  %2755 = vst.msk [vmem:[%s3 + $0x80] sm:$0xf] %vm2722, %v2432
  %2756 = vst.msk [vmem:[%s3 + $0x84] sm:$0xf] %vm2722, %v2433
  %2757 = vst.msk [vmem:[%s3 + $0x88] sm:$0xf] %vm2722, %v2434
  %2758 = vst.msk [vmem:[%s3 + $0x8c] sm:$0xf] %vm2722, %v2435
  %2759 = vst.msk [vmem:[%s3 + $0x90] sm:$0xf] %vm2722, %v2436
  %2760 = vst.msk [vmem:[%s3 + $0x94] sm:$0xf] %vm2722, %v2437
  %2761 = vst.msk [vmem:[%s3 + $0x98] sm:$0xf] %vm2722, %v2438
  %2762 = vst.msk [vmem:[%s3 + $0x9c] sm:$0xf] %vm2722, %v2439
  %2763 = vst.msk [vmem:[%s3 + $0xa0] sm:$0xf] %vm2722, %v2440
  %2764 = vst.msk [vmem:[%s3 + $0xa4] sm:$0xf] %vm2722, %v2441
  %2765 = vst.msk [vmem:[%s3 + $0xa8] sm:$0xf] %vm2722, %v2442
  %2766 = vst.msk [vmem:[%s3 + $0xac] sm:$0xf] %vm2722, %v2443
  %2767 = vst.msk [vmem:[%s3 + $0xb0] sm:$0xf] %vm2722, %v2444
  %2768 = vst.msk [vmem:[%s3 + $0xb4] sm:$0xf] %vm2722, %v2445
  %2769 = vst.msk [vmem:[%s3 + $0xb8] sm:$0xf] %vm2722, %v2446
  %2770 = vst.msk [vmem:[%s3 + $0xbc] sm:$0xf] %vm2722, %v2447
  %2771 = vst.msk [vmem:[%s3 + $0xc0] sm:$0xf] %vm2722, %v2448
  %2772 = vst.msk [vmem:[%s3 + $0xc4] sm:$0xf] %vm2722, %v2449
  %2773 = vst.msk [vmem:[%s3 + $0xc8] sm:$0xf] %vm2722, %v2450
  %2774 = vst.msk [vmem:[%s3 + $0xcc] sm:$0xf] %vm2722, %v2451
  %2775 = vst.msk [vmem:[%s3 + $0xd0] sm:$0xf] %vm2722, %v2452
  %2776 = vst.msk [vmem:[%s3 + $0xd4] sm:$0xf] %vm2722, %v2453
  %2777 = vst.msk [vmem:[%s3 + $0xd8] sm:$0xf] %vm2722, %v2454
  %2778 = vst.msk [vmem:[%s3 + $0xdc] sm:$0xf] %vm2722, %v2455
  %2779 = vst.msk [vmem:[%s3 + $0xe0] sm:$0xf] %vm2722, %v2456
  %2780 = vst.msk [vmem:[%s3 + $0xe4] sm:$0xf] %vm2722, %v2457
  %2781 = vst.msk [vmem:[%s3 + $0xe8] sm:$0xf] %vm2722, %v2458
  %2782 = vst.msk [vmem:[%s3 + $0xec] sm:$0xf] %vm2722, %v2459
  %2783 = vst.msk [vmem:[%s3 + $0xf0] sm:$0xf] %vm2722, %v2460
  %2784 = vst.msk [vmem:[%s3 + $0xf4] sm:$0xf] %vm2722, %v2461
  %2785 = vst.msk [vmem:[%s3 + $0xf8] sm:$0xf] %vm2722, %v2462
  %2786 = vst.msk [vmem:[%s3 + $0xfc] sm:$0xf] %vm2722, %v2463
  %2787 = vst.msk [vmem:[%s3 + $0x100] sm:$0xf] %vm2722, %v2464
  %2788 = vst.msk [vmem:[%s3 + $0x104] sm:$0xf] %vm2722, %v2465
  %2789 = vst.msk [vmem:[%s3 + $0x108] sm:$0xf] %vm2722, %v2466
  %2790 = vst.msk [vmem:[%s3 + $0x10c] sm:$0xf] %vm2722, %v2467
  %2791 = vst.msk [vmem:[%s3 + $0x110] sm:$0xf] %vm2722, %v2468
  %2792 = vst.msk [vmem:[%s3 + $0x114] sm:$0xf] %vm2722, %v2469
  %2793 = vst.msk [vmem:[%s3 + $0x118] sm:$0xf] %vm2722, %v2470
  %2794 = vst.msk [vmem:[%s3 + $0x11c] sm:$0xf] %vm2722, %v2471
  %2795 = vst.msk [vmem:[%s3 + $0x120] sm:$0xf] %vm2722, %v2472
  %2796 = vst.msk [vmem:[%s3 + $0x124] sm:$0xf] %vm2722, %v2473
  %2797 = vst.msk [vmem:[%s3 + $0x128] sm:$0xf] %vm2722, %v2474
  %2798 = vst.msk [vmem:[%s3 + $0x12c] sm:$0xf] %vm2722, %v2475
  %2799 = vst.msk [vmem:[%s3 + $0x130] sm:$0xf] %vm2722, %v2476
  %2800 = vst.msk [vmem:[%s3 + $0x134] sm:$0xf] %vm2722, %v2477
  %2801 = vst.msk [vmem:[%s3 + $0x138] sm:$0xf] %vm2722, %v2478
  %2802 = vst.msk [vmem:[%s3 + $0x13c] sm:$0xf] %vm2722, %v2479
  %2803 = vst.msk [vmem:[%s3 + $0x140] sm:$0xf] %vm2722, %v2480
  %2804 = vst.msk [vmem:[%s3 + $0x144] sm:$0xf] %vm2722, %v2481
  %2805 = vst.msk [vmem:[%s3 + $0x148] sm:$0xf] %vm2722, %v2482
  %2806 = vst.msk [vmem:[%s3 + $0x14c] sm:$0xf] %vm2722, %v2483
  %2807 = vst.msk [vmem:[%s3 + $0x150] sm:$0xf] %vm2722, %v2484
  %2808 = vst.msk [vmem:[%s3 + $0x154] sm:$0xf] %vm2722, %v2485
  %2809 = vst.msk [vmem:[%s3 + $0x158] sm:$0xf] %vm2722, %v2486
  %2810 = vst.msk [vmem:[%s3 + $0x15c] sm:$0xf] %vm2722, %v2487
  %2811 = vst.msk [vmem:[%s3 + $0x160] sm:$0xf] %vm2722, %v2488
  %2812 = vst.msk [vmem:[%s3 + $0x164] sm:$0xf] %vm2722, %v2489
  %2813 = vst.msk [vmem:[%s3 + $0x168] sm:$0xf] %vm2722, %v2490
  %2814 = vst.msk [vmem:[%s3 + $0x16c] sm:$0xf] %vm2722, %v2491
  %2815 = vst.msk [vmem:[%s3 + $0x170] sm:$0xf] %vm2722, %v2492
  %2816 = vst.msk [vmem:[%s3 + $0x174] sm:$0xf] %vm2722, %v2493
  %2817 = vst.msk [vmem:[%s3 + $0x178] sm:$0xf] %vm2722, %v2494
  %2818 = vst.msk [vmem:[%s3 + $0x17c] sm:$0xf] %vm2722, %v2495
  %2819 = vst.msk [vmem:[%s3 + $0x180] sm:$0xf] %vm2722, %v2496
  %2820 = vst.msk [vmem:[%s3 + $0x184] sm:$0xf] %vm2722, %v2497
  %2821 = vst.msk [vmem:[%s3 + $0x188] sm:$0xf] %vm2722, %v2498
  %2822 = vst.msk [vmem:[%s3 + $0x18c] sm:$0xf] %vm2722, %v2499
  %2823 = vst.msk [vmem:[%s3 + $0x190] sm:$0xf] %vm2722, %v2500
  %2824 = vst.msk [vmem:[%s3 + $0x194] sm:$0xf] %vm2722, %v2501
  %2825 = vst.msk [vmem:[%s3 + $0x198] sm:$0xf] %vm2722, %v2502
  %2826 = vst.msk [vmem:[%s3 + $0x19c] sm:$0xf] %vm2722, %v2503
  %2827 = vst.msk [vmem:[%s3 + $0x1a0] sm:$0xf] %vm2722, %v2504
  %2828 = vst.msk [vmem:[%s3 + $0x1a4] sm:$0xf] %vm2722, %v2505
  %2829 = vst.msk [vmem:[%s3 + $0x1a8] sm:$0xf] %vm2722, %v2506
  %2830 = vst.msk [vmem:[%s3 + $0x1ac] sm:$0xf] %vm2722, %v2507
  %2831 = vst.msk [vmem:[%s3 + $0x1b0] sm:$0xf] %vm2722, %v2508
  %2832 = vst.msk [vmem:[%s3 + $0x1b4] sm:$0xf] %vm2722, %v2509
  %2833 = vst.msk [vmem:[%s3 + $0x1b8] sm:$0xf] %vm2722, %v2510
  %2834 = vst.msk [vmem:[%s3 + $0x1bc] sm:$0xf] %vm2722, %v2511
  %2835 = vst.msk [vmem:[%s3 + $0x1c0] sm:$0xf] %vm2722, %v2512
  %2836 = vst.msk [vmem:[%s3 + $0x1c4] sm:$0xf] %vm2722, %v2513
  %2837 = vst.msk [vmem:[%s3 + $0x1c8] sm:$0xf] %vm2722, %v2514
  %2838 = vst.msk [vmem:[%s3 + $0x1cc] sm:$0xf] %vm2722, %v2515
  %2839 = vst.msk [vmem:[%s3 + $0x1d0] sm:$0xf] %vm2722, %v2516
  %2840 = vst.msk [vmem:[%s3 + $0x1d4] sm:$0xf] %vm2722, %v2517
  %2841 = vst.msk [vmem:[%s3 + $0x1d8] sm:$0xf] %vm2722, %v2518
  %2842 = vst.msk [vmem:[%s3 + $0x1dc] sm:$0xf] %vm2722, %v2519
  %2843 = vst.msk [vmem:[%s3 + $0x1e0] sm:$0xf] %vm2722, %v2520
  %2844 = vst.msk [vmem:[%s3 + $0x1e4] sm:$0xf] %vm2722, %v2521
  %2845 = vst.msk [vmem:[%s3 + $0x1e8] sm:$0xf] %vm2722, %v2522
  %2846 = vst.msk [vmem:[%s3 + $0x1ec] sm:$0xf] %vm2722, %v2523
  %2847 = vst.msk [vmem:[%s3 + $0x1f0] sm:$0xf] %vm2722, %v2524
  %2848 = vst.msk [vmem:[%s3 + $0x1f4] sm:$0xf] %vm2722, %v2525
  %2849 = vst.msk [vmem:[%s3 + $0x1f8] sm:$0xf] %vm2722, %v2526
  %2850 = vst.msk [vmem:[%s3 + $0x1fc] sm:$0xf] %vm2722, %v2527
  %2851 = vst.msk [vmem:[%s3 + $0x200] sm:$0xf] %vm2722, %v2528
  %2852 = vst.msk [vmem:[%s3 + $0x204] sm:$0xf] %vm2722, %v2529
  %2853 = vst.msk [vmem:[%s3 + $0x208] sm:$0xf] %vm2722, %v2530
  %2854 = vst.msk [vmem:[%s3 + $0x20c] sm:$0xf] %vm2722, %v2531
  %2855 = vst.msk [vmem:[%s3 + $0x210] sm:$0xf] %vm2722, %v2532
  %2856 = vst.msk [vmem:[%s3 + $0x214] sm:$0xf] %vm2722, %v2533
  %2857 = vst.msk [vmem:[%s3 + $0x218] sm:$0xf] %vm2722, %v2534
  %2858 = vst.msk [vmem:[%s3 + $0x21c] sm:$0xf] %vm2722, %v2535
  %2859 = vst.msk [vmem:[%s3 + $0x220] sm:$0xf] %vm2722, %v2536
  %2860 = vst.msk [vmem:[%s3 + $0x224] sm:$0xf] %vm2722, %v2537
  %2861 = vst.msk [vmem:[%s3 + $0x228] sm:$0xf] %vm2722, %v2538
  %2862 = vst.msk [vmem:[%s3 + $0x22c] sm:$0xf] %vm2722, %v2539
  %2863 = vst.msk [vmem:[%s3 + $0x230] sm:$0xf] %vm2722, %v2540
  %2864 = vst.msk [vmem:[%s3 + $0x234] sm:$0xf] %vm2722, %v2541
  %2865 = vst.msk [vmem:[%s3 + $0x238] sm:$0xf] %vm2722, %v2542
  %2866 = vst.msk [vmem:[%s3 + $0x23c] sm:$0xf] %vm2722, %v2543
  %2867 = vst.msk [vmem:[%s3 + $0x240] sm:$0xf] %vm2722, %v2544
  %2868 = vst.msk [vmem:[%s3 + $0x244] sm:$0xf] %vm2722, %v2545
  %2869 = vst.msk [vmem:[%s3 + $0x248] sm:$0xf] %vm2722, %v2546
  %2870 = vst.msk [vmem:[%s3 + $0x24c] sm:$0xf] %vm2722, %v2547
  %2871 = vst.msk [vmem:[%s3 + $0x250] sm:$0xf] %vm2722, %v2548
  %2872 = vst.msk [vmem:[%s3 + $0x254] sm:$0xf] %vm2722, %v2549
  %2873 = vst.msk [vmem:[%s3 + $0x258] sm:$0xf] %vm2722, %v2550
  %2874 = vst.msk [vmem:[%s3 + $0x25c] sm:$0xf] %vm2722, %v2551
  %2875 = vst.msk [vmem:[%s3 + $0x260] sm:$0xf] %vm2722, %v2552
  %2876 = vst.msk [vmem:[%s3 + $0x264] sm:$0xf] %vm2722, %v2553
  %2877 = vst.msk [vmem:[%s3 + $0x268] sm:$0xf] %vm2722, %v2554
  %2878 = vst.msk [vmem:[%s3 + $0x26c] sm:$0xf] %vm2722, %v2555
  %2879 = vst.msk [vmem:[%s3 + $0x270] sm:$0xf] %vm2722, %v2556
  %2880 = vst.msk [vmem:[%s3 + $0x274] sm:$0xf] %vm2722, %v2557
  %2881 = vst.msk [vmem:[%s3 + $0x278] sm:$0xf] %vm2722, %v2558
  %2882 = vst.msk [vmem:[%s3 + $0x27c] sm:$0xf] %vm2722, %v2559
  %2883 = vst.msk [vmem:[%s3 + $0x280] sm:$0xf] %vm2722, %v2560
  // Predicated region
  $region14: #{tpu_custom_call.1} parent=0 // pred_check
    _
  $region15: #{tpu_custom_call.1} parent=0 // pred_check_branch
    %2885 = sbr.rel (0) target = $region17
  $region16: #{tpu_custom_call.1} parent=0 // pred_region
    _
  $region17: #{tpu_custom_call.1} parent=0 // pred_fallthru
    _
  // Predicated region
  $region18: #{tpu_custom_call.1} parent=0 // pred_check
    _
  $region19: #{tpu_custom_call.1} parent=0 // pred_check_branch
    %2887 = sbr.rel (0) target = $region21
  $region20: #{tpu_custom_call.1} parent=0 // pred_region
    _
  $region21: #{tpu_custom_call.1} parent=0 // pred_fallthru
    _

</llo_original>
